<compile_context>
chip_gen: v7x
topology: tpu7x:2x2x1
jax: 0.10.0
libtpu: 0.0.40
codegen_flags: <defaults>
</compile_context>

<pallas_src>
import functools

import jax
import jax.numpy as jnp
from jax import lax
from jax.experimental import pallas as pl
from jax.experimental.pallas import tpu as pltpu


# ------------------------------ shared math ---------------------------------

def _layernorm(x, gamma, beta, eps=1e-5):
    # Matches torch.nn.LayerNorm(dim) defaults (eps=1e-5, elementwise affine).
    mu = jnp.mean(x, axis=-1, keepdims=True)
    var = jnp.mean(jnp.square(x - mu), axis=-1, keepdims=True)
    return (x - mu) * lax.rsqrt(var + eps) * gamma + beta


def _erf_poly(x):
    # Abramowitz & Stegun 7.1.26, |err| <= 1.5e-7.  Uses only add/mul/div/exp,
    # which are guaranteed VPU/EUP lowerings on v5e/v6e/v7x.
    p = 0.3275911
    a1, a2, a3, a4, a5 = (0.254829592, -0.284496736, 1.421413741,
                          -1.453152027, 1.061405429)
    ax = jnp.abs(x)
    t = 1.0 / (1.0 + p * ax)
    poly = ((((a5 * t + a4) * t + a3) * t + a2) * t + a1) * t
    y = 1.0 - poly * jnp.exp(-ax * ax)
    return jnp.where(x >= 0, y, -y)


def _gelu_exact(x):
    # torch nn.GELU() default (exact erf form).
    return 0.5 * x * (1.0 + _erf_poly(x * 0.7071067811865476))


# ------------------------------ fused kernel --------------------------------
# One grid step = one (batch block, layer).  Depth axis is "arbitrary"
# (sequential); the output block is the resident residual-stream carry.

def transformer_layer_kernel(
    x_ref,
    a_lng_ref, a_lnb_ref, w_qkv_ref, w_out_ref, b_out_ref,
    f_lng_ref, f_lnb_ref, w1_ref, b1_ref, w2_ref, b2_ref,
    o_ref,
    *, num_heads, mxu_dtype, exact_softmax):
    layer = pl.program_id(1)

    # First layer for this batch block: seed the resident residual buffer.
    @pl.when(layer == 0)
    def _():
        o_ref[...] = x_ref[...]

    Bt, N, D = o_ref.shape
    H = num_heads
    dh = D // H
    R = Bt * N

    # Row-flattened residual stream (merging leading dims is layout-free).
    x = o_ref[...].astype(jnp.float32).reshape(R, D)

    def mm(a, b):
        # Activations cast to the MXU dtype; weights already stored in it.
        return jnp.dot(a.astype(mxu_dtype), b, preferred_element_type=jnp.float32)

    # -------- attention sub-layer: x + to_out(MHA(LayerNorm(x))) -------------
    # TODO(synk): mask path not implemented (mask=None semantics only).
    xn = _layernorm(x, a_lng_ref[0, 0], a_lnb_ref[0, 0])        # (R, D) f32
    # Single lane-dense K=D, M=3D projection; softmax scale pre-folded into W_q.
    qkv = mm(xn, w_qkv_ref[0]).astype(mxu_dtype).reshape(Bt, N, 3 * D)

    dn_scores = (((2,), (2,)), ((0,), (0,)))   # (b,N,d) x (b,M,d) -> (b,N,M)
    dn_ctx = (((2,), (1,)), ((0,), (0,)))      # (b,N,M) x (b,M,d) -> (b,N,d)

    ctx_heads = []
    for hh in range(H):   # static unroll; score/ctx matmuls are inherently per-(b,h)
        q_h = qkv[:, :, hh * dh:(hh + 1) * dh]                   # (Bt, N, dh)
        k_h = qkv[:, :, D + hh * dh:D + (hh + 1) * dh]
        v_h = qkv[:, :, 2 * D + hh * dh:2 * D + (hh + 1) * dh]
        s = lax.dot_general(q_h, k_h, dimension_numbers=dn_scores,
                            preferred_element_type=jnp.float32)  # (Bt, N, N) f32
        s = s - jnp.max(s, axis=-1, keepdims=True)
        e = jnp.exp(s)
        den = jnp.sum(e, axis=-1, keepdims=True)
        if exact_softmax:
            p = e / den
        else:
            p = e * pl.reciprocal(den, approx=True)
        ctx_heads.append(
            lax.dot_general(p.astype(mxu_dtype), v_h, dimension_numbers=dn_ctx,
                            preferred_element_type=jnp.float32))  # (Bt, N, dh)
    # concat(heads) along lanes -> single K=D output projection (no head-sum).
    ctx = jnp.concatenate(ctx_heads, axis=-1).reshape(R, D)
    x = x + mm(ctx, w_out_ref[0]) + b_out_ref[0, 0]

    # -------- feed-forward sub-layer: x + W2(GELU(W1(LayerNorm(x)) + b1)) + b2
    xn2 = _layernorm(x, f_lng_ref[0, 0], f_lnb_ref[0, 0])
    h = mm(xn2, w1_ref[0]) + b1_ref[0, 0]
    h = _gelu_exact(h)
    x = x + mm(h, w2_ref[0]) + b2_ref[0, 0]

    o_ref[...] = x.reshape(Bt, N, D).astype(o_ref.dtype)


# -------------------------------- wrapper ------------------------------------

def transformer_forward(x, params, num_heads, *, mxu_dtype=jnp.bfloat16,
                        batch_block=None, exact_softmax=None):
    B, N, D = x.shape
    depth = params["w_qkv"].shape[0]
    Hf = params["w1"].shape[-1]
    assert D % num_heads == 0

    if batch_block is None:
        # Default: >=2 batch blocks (keeps v7x's 2 TensorCores busy) while the
        # weights are DMA'd at most num_batch_blocks times.  On v5e/v6e (1 TC)
        # pass batch_block=B to fold the whole batch and fetch weights once.
        batch_block = max((d for d in range(1, B // 2 + 1) if B % d == 0),
                          default=B)
    assert B % batch_block == 0
    num_bb = B // batch_block

    if exact_softmax is None:
        exact_softmax = (mxu_dtype == jnp.float32)

    # One-time XLA-side weight prep (kept out of the kernel's per-step work):
    #  * fold the reference's dim**-0.5 score scale into W_q,
    #  * store the big matmul weights in the MXU dtype in HBM (halves DMA).
    scale = float(D) ** -0.5
    w_qkv = params["w_qkv"].at[:, :, :D].multiply(scale).astype(mxu_dtype)
    w_out = params["w_out"].astype(mxu_dtype)
    w1 = params["w1"].astype(mxu_dtype)
    w2 = params["w2"].astype(mxu_dtype)

    def wspec(shape):
        # Per-layer weight block, indexed by the depth grid axis only.
        nz = len(shape) - 1
        return pl.BlockSpec(shape, lambda b, l, _nz=nz: (l,) + (0,) * _nz)

    io_spec = pl.BlockSpec((batch_block, N, D), lambda b, l: (b, 0, 0))

    kernel = functools.partial(transformer_layer_kernel, num_heads=num_heads,
                               mxu_dtype=mxu_dtype, exact_softmax=exact_softmax)
    return pl.pallas_call(
        kernel,
        out_shape=jax.ShapeDtypeStruct((B, N, D), x.dtype),
        grid=(num_bb, depth),
        in_specs=[
            io_spec,
            wspec((1, 1, D)),          # attn LN gamma (f32)
            wspec((1, 1, D)),          # attn LN beta  (f32)
            wspec((1, D, 3 * D)),      # to_qkv weight, lane-dense, scale folded
            wspec((1, D, D)),          # to_out weight, lane-dense
            wspec((1, 1, D)),          # to_out bias
            wspec((1, 1, D)),          # ff LN gamma
            wspec((1, 1, D)),          # ff LN beta
            wspec((1, D, Hf)),         # fc1 weight
            wspec((1, 1, Hf)),         # fc1 bias
            wspec((1, Hf, D)),         # fc2 weight
            wspec((1, 1, D)),          # fc2 bias
        ],
        out_specs=pl.BlockSpec((batch_block, N, D), lambda b, l: (b, 0, 0)),
        compiler_params=pltpu.CompilerParams(
            # batch axis parallel (v7x megacore), depth axis sequential (carry).
            dimension_semantics=("parallel", "arbitrary"),
            # Plenty for these blocks; sweep toward ~96-110 MiB on v5e/v6e (and
            # keep well under 64 MiB on v7x) when token/batch blocks grow.
            vmem_limit_bytes=32 * 1024 * 1024,
        ),
    )(x, params["a_ln_g"], params["a_ln_b"], w_qkv, w_out, params["b_out"],
      params["f_ln_g"], params["f_ln_b"], w1, params["b1"], w2, params["b2"])


# --------------------------- deterministic init -------------------------------

def init_transformer_params(key, dim, depth, mlp_dim):
    ks = jax.random.split(key, 7)
    s = 0.02
    return {
        "a_ln_g": jnp.ones((depth, 1, dim), jnp.float32),
        "a_ln_b": jnp.zeros((depth, 1, dim), jnp.float32),
        # to_qkv.weight (3*dim, dim) pre-transposed -> (dim, 3*dim); output
        # columns ordered (qkv, head, head_dim) like rearrange 'b n (qkv h d)'.
        "w_qkv": s * jax.random.normal(ks[0], (depth, dim, 3 * dim), jnp.float32),
        # to_out.weight (dim, dim) pre-transposed -> (in=(head, head_dim), out).
        "w_out": s * jax.random.normal(ks[1], (depth, dim, dim), jnp.float32),
        "b_out": s * jax.random.normal(ks[2], (depth, 1, dim), jnp.float32),
        "f_ln_g": jnp.ones((depth, 1, dim), jnp.float32),
        "f_ln_b": jnp.zeros((depth, 1, dim), jnp.float32),
        "w1": s * jax.random.normal(ks[3], (depth, dim, mlp_dim), jnp.float32),
        "b1": s * jax.random.normal(ks[4], (depth, 1, mlp_dim), jnp.float32),
        "w2": s * jax.random.normal(ks[5], (depth, mlp_dim, dim), jnp.float32),
        "b2": s * jax.random.normal(ks[6], (depth, 1, dim), jnp.float32),
    }


# ----------------------- pure-JAX reference (tolerance check) ----------------

def transformer_reference(x, params, num_heads):
    depth = params["w_qkv"].shape[0]
    B, N, D = x.shape
    H = num_heads
    dh = D // H
    scale = float(D) ** -0.5       # reference module uses dim**-0.5 (full dim)
    for l in range(depth):
        xn = _layernorm(x, params["a_ln_g"][l, 0], params["a_ln_b"][l, 0])
        qkv = (xn @ params["w_qkv"][l]).reshape(B, N, 3, H, dh)
        q, k, v = qkv[:, :, 0], qkv[:, :, 1], qkv[:, :, 2]     # (B, N, H, dh)
        s = jnp.einsum("bihd,bjhd->bhij", q, k) * scale
        p = jax.nn.softmax(s, axis=-1)
        ctx = jnp.einsum("bhij,bjhd->bihd", p, v).reshape(B, N, D)
        x = x + ctx @ params["w_out"][l] + params["b_out"][l, 0]
        xn2 = _layernorm(x, params["f_ln_g"][l, 0], params["f_ln_b"][l, 0])
        h = jax.nn.gelu(xn2 @ params["w1"][l] + params["b1"][l, 0],
                        approximate=False)
        x = x + h @ params["w2"][l] + params["b2"][l, 0]
    return x


# ----------------------------------- main -------------------------------------

if __name__ == "__main__":
    # Small but lane-dense shapes (D multiple of 128 keeps every store unmasked).
    B, N, DIM = 2, 8, 128
    DEPTH, NUM_HEADS, MLP_DIM = 2, 4, 256

    key = jax.random.PRNGKey(0)
    xkey, pkey = jax.random.split(key)
    x = jax.random.normal(xkey, (B, N, DIM), jnp.float32)
    params = init_transformer_params(pkey, DIM, DEPTH, MLP_DIM)

    ref = transformer_reference(x, params, NUM_HEADS)

    # f32 weights + exact softmax division: semantic verification path.
    out_f32 = jax.block_until_ready(
        transformer_forward(x, params, NUM_HEADS, mxu_dtype=jnp.float32))
    assert out_f32.shape == (B, N, DIM) and out_f32.dtype == jnp.float32
    assert float(jnp.max(jnp.abs(out_f32 - ref))) < 1e-3

    # bf16 weights in HBM (f32 accumulation): recommended fast path.
    out = jax.block_until_ready(
        transformer_forward(x, params, NUM_HEADS, mxu_dtype=jnp.bfloat16))
    assert out.shape == (B, N, DIM) and out.dtype == jnp.float32
    assert float(jnp.max(jnp.abs(out - ref))) < 5e-2

    print("KERNEL_OK")
</pallas_src>

<mosaic_0001>
module attributes {stable_mosaic.version = 11 : i64} {
  func.func @transformer_layer_kernel(%arg0: i32, %arg1: i32, %arg2: memref<1x8x128xf32, #tpu.memory_space<vmem>>, %arg3: memref<1x1x128xf32, #tpu.memory_space<vmem>>, %arg4: memref<1x1x128xf32, #tpu.memory_space<vmem>>, %arg5: memref<1x128x384xf32, #tpu.memory_space<vmem>>, %arg6: memref<1x128x128xf32, #tpu.memory_space<vmem>>, %arg7: memref<1x1x128xf32, #tpu.memory_space<vmem>>, %arg8: memref<1x1x128xf32, #tpu.memory_space<vmem>>, %arg9: memref<1x1x128xf32, #tpu.memory_space<vmem>>, %arg10: memref<1x128x256xf32, #tpu.memory_space<vmem>>, %arg11: memref<1x1x256xf32, #tpu.memory_space<vmem>>, %arg12: memref<1x256x128xf32, #tpu.memory_space<vmem>>, %arg13: memref<1x1x128xf32, #tpu.memory_space<vmem>>, %arg14: memref<1x8x128xf32, #tpu.memory_space<vmem>>) attributes {dimension_semantics = [#tpu.dimension_semantics<parallel>, #tpu.dimension_semantics<arbitrary>], iteration_bounds = array<i64: 2, 2>, scalar_prefetch = 0 : i64, scratch_operands = 0 : i64, tpu.core_type = #tpu.core_type<tc>, window_params = [{transform_indices = @transform_0, window_bounds = array<i64: 1, 8, 128>}, {transform_indices = @transform_1, window_bounds = array<i64: 1, 1, 128>}, {transform_indices = @transform_2, window_bounds = array<i64: 1, 1, 128>}, {transform_indices = @transform_3, window_bounds = array<i64: 1, 128, 384>}, {transform_indices = @transform_4, window_bounds = array<i64: 1, 128, 128>}, {transform_indices = @transform_5, window_bounds = array<i64: 1, 1, 128>}, {transform_indices = @transform_6, window_bounds = array<i64: 1, 1, 128>}, {transform_indices = @transform_7, window_bounds = array<i64: 1, 1, 128>}, {transform_indices = @transform_8, window_bounds = array<i64: 1, 128, 256>}, {transform_indices = @transform_9, window_bounds = array<i64: 1, 1, 256>}, {transform_indices = @transform_10, window_bounds = array<i64: 1, 256, 128>}, {transform_indices = @transform_11, window_bounds = array<i64: 1, 1, 128>}, {transform_indices = @transform_12, window_bounds = array<i64: 1, 8, 128>}]} {
    %c0_i32 = arith.constant 0 : i32
    %0 = arith.cmpi eq, %arg1, %c0_i32 : i32
    %1 = arith.extui %0 : i1 to i32
    %c0_i32_0 = arith.constant 0 : i32
    %2 = arith.cmpi ne, %1, %c0_i32_0 : i32
    scf.if %2 {
      %c0_83 = arith.constant 0 : index
      %c0_84 = arith.constant 0 : index
      %c0_85 = arith.constant 0 : index
      %191 = vector.load %arg2[%c0_83, %c0_84, %c0_85] : memref<1x8x128xf32, #tpu.memory_space<vmem>>, vector<1x8x128xf32>
      %c0_86 = arith.constant 0 : index
      %c0_87 = arith.constant 0 : index
      %c0_88 = arith.constant 0 : index
      %192 = vector.load %arg14[%c0_86, %c0_87, %c0_88] : memref<1x8x128xf32, #tpu.memory_space<vmem>>, vector<1x8x128xf32>
      tpu.vector_store %arg14[%c0_86, %c0_87, %c0_88], %191 {strides = array<i32>} : memref<1x8x128xf32, #tpu.memory_space<vmem>>, vector<1x8x128xf32>,
    } else {
    }
    %c0 = arith.constant 0 : index
    %c0_1 = arith.constant 0 : index
    %c0_2 = arith.constant 0 : index
    %3 = vector.load %arg14[%c0, %c0_1, %c0_2] : memref<1x8x128xf32, #tpu.memory_space<vmem>>, vector<1x8x128xf32>
    %4 = vector.shape_cast %3 : vector<1x8x128xf32> to vector<8x128xf32>
    %c0_3 = arith.constant 0 : index
    %c0_4 = arith.constant 0 : index
    %c0_5 = arith.constant 0 : index
    %5 = vector.load %arg3[%c0_3, %c0_4, %c0_5] : memref<1x1x128xf32, #tpu.memory_space<vmem>>, vector<1x1x128xf32>
    %6 = vector.shape_cast %5 : vector<1x1x128xf32> to vector<128xf32>
    %c0_6 = arith.constant 0 : index
    %c0_7 = arith.constant 0 : index
    %c0_8 = arith.constant 0 : index
    %7 = vector.load %arg4[%c0_6, %c0_7, %c0_8] : memref<1x1x128xf32, #tpu.memory_space<vmem>>, vector<1x1x128xf32>
    %8 = vector.shape_cast %7 : vector<1x1x128xf32> to vector<128xf32>
    %cst = arith.constant dense<0.000000e+00> : vector<8xf32>
    %9 = vector.multi_reduction <add>, %4, %cst [1] : vector<8x128xf32> to vector<8xf32>
    %10 = vector.shape_cast %9 : vector<8xf32> to vector<8x1xf32>
    %cst_9 = arith.constant 1.280000e+02 : f32
    %11 = vector.broadcast %cst_9 : f32 to vector<8x1xf32>
    %12 = arith.divf %10, %11 : vector<8x1xf32>
    %13 = vector.broadcast %12 : vector<8x1xf32> to vector<8x128xf32>
    %14 = arith.subf %4, %13 : vector<8x128xf32>
    %15 = arith.mulf %14, %14 : vector<8x128xf32>
    %cst_10 = arith.constant dense<0.000000e+00> : vector<8xf32>
    %16 = vector.multi_reduction <add>, %15, %cst_10 [1] : vector<8x128xf32> to vector<8xf32>
    %17 = vector.shape_cast %16 : vector<8xf32> to vector<8x1xf32>
    %cst_11 = arith.constant 1.280000e+02 : f32
    %18 = vector.broadcast %cst_11 : f32 to vector<8x1xf32>
    %19 = arith.divf %17, %18 : vector<8x1xf32>
    %20 = vector.broadcast %12 : vector<8x1xf32> to vector<8x128xf32>
    %21 = arith.subf %4, %20 : vector<8x128xf32>
    %cst_12 = arith.constant 9.99999974E-6 : f32
    %22 = vector.broadcast %cst_12 : f32 to vector<8x1xf32>
    %23 = arith.addf %19, %22 : vector<8x1xf32>
    %24 = math.rsqrt %23 : vector<8x1xf32>
    %25 = vector.broadcast %24 : vector<8x1xf32> to vector<8x128xf32>
    %26 = arith.mulf %21, %25 : vector<8x128xf32>
    %27 = vector.shape_cast %6 : vector<128xf32> to vector<1x128xf32>
    %28 = vector.broadcast %27 : vector<1x128xf32> to vector<8x128xf32>
    %29 = arith.mulf %26, %28 : vector<8x128xf32>
    %30 = vector.shape_cast %8 : vector<128xf32> to vector<1x128xf32>
    %31 = vector.broadcast %30 : vector<1x128xf32> to vector<8x128xf32>
    %32 = arith.addf %29, %31 : vector<8x128xf32>
    %c0_13 = arith.constant 0 : index
    %c0_14 = arith.constant 0 : index
    %c0_15 = arith.constant 0 : index
    %33 = vector.load %arg5[%c0_13, %c0_14, %c0_15] : memref<1x128x384xf32, #tpu.memory_space<vmem>>, vector<1x128x384xf32>
    %34 = vector.shape_cast %33 : vector<1x128x384xf32> to vector<128x384xf32>
    %cst_16 = arith.constant dense<0.000000e+00> : vector<8x384xf32>
    %35 = tpu.matmul %32, %34, %cst_16 {dimension_numbers = #tpu.dot_dimension_numbers<[1], [0], [0], [1], [0, 0, 1, 1], [], []>} : vector<8x128xf32>, vector<128x384xf32>, vector<8x384xf32> -> vector<8x384xf32>
    %36 = vector.shape_cast %35 : vector<8x384xf32> to vector<1x8x384xf32>
    %37 = vector.extract_strided_slice %36 {offsets = [0, 0, 0], sizes = [1, 8, 32], strides = [1, 1, 1]} : vector<1x8x384xf32> to vector<1x8x32xf32>
    %38 = vector.extract_strided_slice %36 {offsets = [0, 0, 128], sizes = [1, 8, 32], strides = [1, 1, 1]} : vector<1x8x384xf32> to vector<1x8x32xf32>
    %39 = vector.extract_strided_slice %36 {offsets = [0, 0, 256], sizes = [1, 8, 32], strides = [1, 1, 1]} : vector<1x8x384xf32> to vector<1x8x32xf32>
    %cst_17 = arith.constant dense<0.000000e+00> : vector<1x8x8xf32>
    %40 = tpu.matmul %37, %38, %cst_17 {dimension_numbers = #tpu.dot_dimension_numbers<[2], [2], [1], [1], [0, 0, 0, 1, 1, 1], [0], [0]>} : vector<1x8x32xf32>, vector<1x8x32xf32>, vector<1x8x8xf32> -> vector<1x8x8xf32>
    %cst_18 = arith.constant dense<0xFF800000> : vector<1x8xf32>
    %41 = vector.multi_reduction <maximumf>, %40, %cst_18 [2] : vector<1x8x8xf32> to vector<1x8xf32>
    %42 = vector.shape_cast %41 : vector<1x8xf32> to vector<1x8x1xf32>
    %43 = vector.broadcast %42 : vector<1x8x1xf32> to vector<1x8x8xf32>
    %44 = arith.subf %40, %43 : vector<1x8x8xf32>
    %45 = math.exp %44 : vector<1x8x8xf32>
    %cst_19 = arith.constant dense<0.000000e+00> : vector<1x8xf32>
    %46 = vector.multi_reduction <add>, %45, %cst_19 [2] : vector<1x8x8xf32> to vector<1x8xf32>
    %47 = vector.shape_cast %46 : vector<1x8xf32> to vector<1x8x1xf32>
    %48 = vector.broadcast %47 : vector<1x8x1xf32> to vector<1x8x8xf32>
    %49 = arith.divf %45, %48 : vector<1x8x8xf32>
    %cst_20 = arith.constant dense<0.000000e+00> : vector<1x8x32xf32>
    %50 = tpu.matmul %49, %39, %cst_20 {dimension_numbers = #tpu.dot_dimension_numbers<[2], [1], [1], [2], [0, 0, 0, 1, 1, 2], [0], [0]>} : vector<1x8x8xf32>, vector<1x8x32xf32>, vector<1x8x32xf32> -> vector<1x8x32xf32>
    %51 = vector.extract_strided_slice %36 {offsets = [0, 0, 32], sizes = [1, 8, 32], strides = [1, 1, 1]} : vector<1x8x384xf32> to vector<1x8x32xf32>
    %52 = vector.extract_strided_slice %36 {offsets = [0, 0, 160], sizes = [1, 8, 32], strides = [1, 1, 1]} : vector<1x8x384xf32> to vector<1x8x32xf32>
    %53 = vector.extract_strided_slice %36 {offsets = [0, 0, 288], sizes = [1, 8, 32], strides = [1, 1, 1]} : vector<1x8x384xf32> to vector<1x8x32xf32>
    %cst_21 = arith.constant dense<0.000000e+00> : vector<1x8x8xf32>
    %54 = tpu.matmul %51, %52, %cst_21 {dimension_numbers = #tpu.dot_dimension_numbers<[2], [2], [1], [1], [0, 0, 0, 1, 1, 1], [0], [0]>} : vector<1x8x32xf32>, vector<1x8x32xf32>, vector<1x8x8xf32> -> vector<1x8x8xf32>
    %cst_22 = arith.constant dense<0xFF800000> : vector<1x8xf32>
    %55 = vector.multi_reduction <maximumf>, %54, %cst_22 [2] : vector<1x8x8xf32> to vector<1x8xf32>
    %56 = vector.shape_cast %55 : vector<1x8xf32> to vector<1x8x1xf32>
    %57 = vector.broadcast %56 : vector<1x8x1xf32> to vector<1x8x8xf32>
    %58 = arith.subf %54, %57 : vector<1x8x8xf32>
    %59 = math.exp %58 : vector<1x8x8xf32>
    %cst_23 = arith.constant dense<0.000000e+00> : vector<1x8xf32>
    %60 = vector.multi_reduction <add>, %59, %cst_23 [2] : vector<1x8x8xf32> to vector<1x8xf32>
    %61 = vector.shape_cast %60 : vector<1x8xf32> to vector<1x8x1xf32>
    %62 = vector.broadcast %61 : vector<1x8x1xf32> to vector<1x8x8xf32>
    %63 = arith.divf %59, %62 : vector<1x8x8xf32>
    %cst_24 = arith.constant dense<0.000000e+00> : vector<1x8x32xf32>
    %64 = tpu.matmul %63, %53, %cst_24 {dimension_numbers = #tpu.dot_dimension_numbers<[2], [1], [1], [2], [0, 0, 0, 1, 1, 2], [0], [0]>} : vector<1x8x8xf32>, vector<1x8x32xf32>, vector<1x8x32xf32> -> vector<1x8x32xf32>
    %65 = vector.extract_strided_slice %36 {offsets = [0, 0, 64], sizes = [1, 8, 32], strides = [1, 1, 1]} : vector<1x8x384xf32> to vector<1x8x32xf32>
    %66 = vector.extract_strided_slice %36 {offsets = [0, 0, 192], sizes = [1, 8, 32], strides = [1, 1, 1]} : vector<1x8x384xf32> to vector<1x8x32xf32>
    %67 = vector.extract_strided_slice %36 {offsets = [0, 0, 320], sizes = [1, 8, 32], strides = [1, 1, 1]} : vector<1x8x384xf32> to vector<1x8x32xf32>
    %cst_25 = arith.constant dense<0.000000e+00> : vector<1x8x8xf32>
    %68 = tpu.matmul %65, %66, %cst_25 {dimension_numbers = #tpu.dot_dimension_numbers<[2], [2], [1], [1], [0, 0, 0, 1, 1, 1], [0], [0]>} : vector<1x8x32xf32>, vector<1x8x32xf32>, vector<1x8x8xf32> -> vector<1x8x8xf32>
    %cst_26 = arith.constant dense<0xFF800000> : vector<1x8xf32>
    %69 = vector.multi_reduction <maximumf>, %68, %cst_26 [2] : vector<1x8x8xf32> to vector<1x8xf32>
    %70 = vector.shape_cast %69 : vector<1x8xf32> to vector<1x8x1xf32>
    %71 = vector.broadcast %70 : vector<1x8x1xf32> to vector<1x8x8xf32>
    %72 = arith.subf %68, %71 : vector<1x8x8xf32>
    %73 = math.exp %72 : vector<1x8x8xf32>
    %cst_27 = arith.constant dense<0.000000e+00> : vector<1x8xf32>
    %74 = vector.multi_reduction <add>, %73, %cst_27 [2] : vector<1x8x8xf32> to vector<1x8xf32>
    %75 = vector.shape_cast %74 : vector<1x8xf32> to vector<1x8x1xf32>
    %76 = vector.broadcast %75 : vector<1x8x1xf32> to vector<1x8x8xf32>
    %77 = arith.divf %73, %76 : vector<1x8x8xf32>
    %cst_28 = arith.constant dense<0.000000e+00> : vector<1x8x32xf32>
    %78 = tpu.matmul %77, %67, %cst_28 {dimension_numbers = #tpu.dot_dimension_numbers<[2], [1], [1], [2], [0, 0, 0, 1, 1, 2], [0], [0]>} : vector<1x8x8xf32>, vector<1x8x32xf32>, vector<1x8x32xf32> -> vector<1x8x32xf32>
    %79 = vector.extract_strided_slice %36 {offsets = [0, 0, 96], sizes = [1, 8, 32], strides = [1, 1, 1]} : vector<1x8x384xf32> to vector<1x8x32xf32>
    %80 = vector.extract_strided_slice %36 {offsets = [0, 0, 224], sizes = [1, 8, 32], strides = [1, 1, 1]} : vector<1x8x384xf32> to vector<1x8x32xf32>
    %81 = vector.extract_strided_slice %36 {offsets = [0, 0, 352], sizes = [1, 8, 32], strides = [1, 1, 1]} : vector<1x8x384xf32> to vector<1x8x32xf32>
    %cst_29 = arith.constant dense<0.000000e+00> : vector<1x8x8xf32>
    %82 = tpu.matmul %79, %80, %cst_29 {dimension_numbers = #tpu.dot_dimension_numbers<[2], [2], [1], [1], [0, 0, 0, 1, 1, 1], [0], [0]>} : vector<1x8x32xf32>, vector<1x8x32xf32>, vector<1x8x8xf32> -> vector<1x8x8xf32>
    %cst_30 = arith.constant dense<0xFF800000> : vector<1x8xf32>
    %83 = vector.multi_reduction <maximumf>, %82, %cst_30 [2] : vector<1x8x8xf32> to vector<1x8xf32>
    %84 = vector.shape_cast %83 : vector<1x8xf32> to vector<1x8x1xf32>
    %85 = vector.broadcast %84 : vector<1x8x1xf32> to vector<1x8x8xf32>
    %86 = arith.subf %82, %85 : vector<1x8x8xf32>
    %87 = math.exp %86 : vector<1x8x8xf32>
    %cst_31 = arith.constant dense<0.000000e+00> : vector<1x8xf32>
    %88 = vector.multi_reduction <add>, %87, %cst_31 [2] : vector<1x8x8xf32> to vector<1x8xf32>
    %89 = vector.shape_cast %88 : vector<1x8xf32> to vector<1x8x1xf32>
    %90 = vector.broadcast %89 : vector<1x8x1xf32> to vector<1x8x8xf32>
    %91 = arith.divf %87, %90 : vector<1x8x8xf32>
    %cst_32 = arith.constant dense<0.000000e+00> : vector<1x8x32xf32>
    %92 = tpu.matmul %91, %81, %cst_32 {dimension_numbers = #tpu.dot_dimension_numbers<[2], [1], [1], [2], [0, 0, 0, 1, 1, 2], [0], [0]>} : vector<1x8x8xf32>, vector<1x8x32xf32>, vector<1x8x32xf32> -> vector<1x8x32xf32>
    %93 = tpu.concatenate %50, %64, %78, %92 in 2 : vector<1x8x32xf32>, vector<1x8x32xf32>, vector<1x8x32xf32>, vector<1x8x32xf32> -> vector<1x8x128xf32>
    %94 = vector.shape_cast %93 : vector<1x8x128xf32> to vector<8x128xf32>
    %c0_33 = arith.constant 0 : index
    %c0_34 = arith.constant 0 : index
    %c0_35 = arith.constant 0 : index
    %95 = vector.load %arg6[%c0_33, %c0_34, %c0_35] : memref<1x128x128xf32, #tpu.memory_space<vmem>>, vector<1x128x128xf32>
    %96 = vector.shape_cast %95 : vector<1x128x128xf32> to vector<128x128xf32>
    %cst_36 = arith.constant dense<0.000000e+00> : vector<8x128xf32>
    %97 = tpu.matmul %94, %96, %cst_36 {dimension_numbers = #tpu.dot_dimension_numbers<[1], [0], [0], [1], [0, 0, 1, 1], [], []>} : vector<8x128xf32>, vector<128x128xf32>, vector<8x128xf32> -> vector<8x128xf32>
    %98 = arith.addf %4, %97 : vector<8x128xf32>
    %c0_37 = arith.constant 0 : index
    %c0_38 = arith.constant 0 : index
    %c0_39 = arith.constant 0 : index
    %99 = vector.load %arg7[%c0_37, %c0_38, %c0_39] : memref<1x1x128xf32, #tpu.memory_space<vmem>>, vector<1x1x128xf32>
    %100 = vector.shape_cast %99 : vector<1x1x128xf32> to vector<128xf32>
    %101 = vector.shape_cast %100 : vector<128xf32> to vector<1x128xf32>
    %102 = vector.broadcast %101 : vector<1x128xf32> to vector<8x128xf32>
    %103 = arith.addf %98, %102 : vector<8x128xf32>
    %c0_40 = arith.constant 0 : index
    %c0_41 = arith.constant 0 : index
    %c0_42 = arith.constant 0 : index
    %104 = vector.load %arg8[%c0_40, %c0_41, %c0_42] : memref<1x1x128xf32, #tpu.memory_space<vmem>>, vector<1x1x128xf32>
    %105 = vector.shape_cast %104 : vector<1x1x128xf32> to vector<128xf32>
    %c0_43 = arith.constant 0 : index
    %c0_44 = arith.constant 0 : index
    %c0_45 = arith.constant 0 : index
    %106 = vector.load %arg9[%c0_43, %c0_44, %c0_45] : memref<1x1x128xf32, #tpu.memory_space<vmem>>, vector<1x1x128xf32>
    %107 = vector.shape_cast %106 : vector<1x1x128xf32> to vector<128xf32>
    %cst_46 = arith.constant dense<0.000000e+00> : vector<8xf32>
    %108 = vector.multi_reduction <add>, %103, %cst_46 [1] : vector<8x128xf32> to vector<8xf32>
    %109 = vector.shape_cast %108 : vector<8xf32> to vector<8x1xf32>
    %cst_47 = arith.constant 1.280000e+02 : f32
    %110 = vector.broadcast %cst_47 : f32 to vector<8x1xf32>
    %111 = arith.divf %109, %110 : vector<8x1xf32>
    %112 = vector.broadcast %111 : vector<8x1xf32> to vector<8x128xf32>
    %113 = arith.subf %103, %112 : vector<8x128xf32>
    %114 = arith.mulf %113, %113 : vector<8x128xf32>
    %cst_48 = arith.constant dense<0.000000e+00> : vector<8xf32>
    %115 = vector.multi_reduction <add>, %114, %cst_48 [1] : vector<8x128xf32> to vector<8xf32>
    %116 = vector.shape_cast %115 : vector<8xf32> to vector<8x1xf32>
    %cst_49 = arith.constant 1.280000e+02 : f32
    %117 = vector.broadcast %cst_49 : f32 to vector<8x1xf32>
    %118 = arith.divf %116, %117 : vector<8x1xf32>
    %119 = vector.broadcast %111 : vector<8x1xf32> to vector<8x128xf32>
    %120 = arith.subf %103, %119 : vector<8x128xf32>
    %cst_50 = arith.constant 9.99999974E-6 : f32
    %121 = vector.broadcast %cst_50 : f32 to vector<8x1xf32>
    %122 = arith.addf %118, %121 : vector<8x1xf32>
    %123 = math.rsqrt %122 : vector<8x1xf32>
    %124 = vector.broadcast %123 : vector<8x1xf32> to vector<8x128xf32>
    %125 = arith.mulf %120, %124 : vector<8x128xf32>
    %126 = vector.shape_cast %105 : vector<128xf32> to vector<1x128xf32>
    %127 = vector.broadcast %126 : vector<1x128xf32> to vector<8x128xf32>
    %128 = arith.mulf %125, %127 : vector<8x128xf32>
    %129 = vector.shape_cast %107 : vector<128xf32> to vector<1x128xf32>
    %130 = vector.broadcast %129 : vector<1x128xf32> to vector<8x128xf32>
    %131 = arith.addf %128, %130 : vector<8x128xf32>
    %c0_51 = arith.constant 0 : index
    %c0_52 = arith.constant 0 : index
    %c0_53 = arith.constant 0 : index
    %132 = vector.load %arg10[%c0_51, %c0_52, %c0_53] : memref<1x128x256xf32, #tpu.memory_space<vmem>>, vector<1x128x256xf32>
    %133 = vector.shape_cast %132 : vector<1x128x256xf32> to vector<128x256xf32>
    %cst_54 = arith.constant dense<0.000000e+00> : vector<8x256xf32>
    %134 = tpu.matmul %131, %133, %cst_54 {dimension_numbers = #tpu.dot_dimension_numbers<[1], [0], [0], [1], [0, 0, 1, 1], [], []>} : vector<8x128xf32>, vector<128x256xf32>, vector<8x256xf32> -> vector<8x256xf32>
    %c0_55 = arith.constant 0 : index
    %c0_56 = arith.constant 0 : index
    %c0_57 = arith.constant 0 : index
    %135 = vector.load %arg11[%c0_55, %c0_56, %c0_57] : memref<1x1x256xf32, #tpu.memory_space<vmem>>, vector<1x1x256xf32>
    %136 = vector.shape_cast %135 : vector<1x1x256xf32> to vector<256xf32>
    %137 = vector.shape_cast %136 : vector<256xf32> to vector<1x256xf32>
    %138 = vector.broadcast %137 : vector<1x256xf32> to vector<8x256xf32>
    %139 = arith.addf %134, %138 : vector<8x256xf32>
    %cst_58 = arith.constant 5.000000e-01 : f32
    %140 = vector.broadcast %cst_58 : f32 to vector<8x256xf32>
    %141 = arith.mulf %140, %139 : vector<8x256xf32>
    %cst_59 = arith.constant 0.707106769 : f32
    %142 = vector.broadcast %cst_59 : f32 to vector<8x256xf32>
    %143 = arith.mulf %139, %142 : vector<8x256xf32>
    %144 = math.absf %143 : vector<8x256xf32>
    %cst_60 = arith.constant 0.327591091 : f32
    %145 = vector.broadcast %cst_60 : f32 to vector<8x256xf32>
    %146 = arith.mulf %145, %144 : vector<8x256xf32>
    %cst_61 = arith.constant 1.000000e+00 : f32
    %147 = vector.broadcast %cst_61 : f32 to vector<8x256xf32>
    %148 = arith.addf %147, %146 : vector<8x256xf32>
    %cst_62 = arith.constant 1.000000e+00 : f32
    %149 = vector.broadcast %cst_62 : f32 to vector<8x256xf32>
    %150 = arith.divf %149, %148 : vector<8x256xf32>
    %cst_63 = arith.constant 1.06140542 : f32
    %151 = vector.broadcast %cst_63 : f32 to vector<8x256xf32>
    %152 = arith.mulf %151, %150 : vector<8x256xf32>
    %cst_64 = arith.constant -1.45315206 : f32
    %153 = vector.broadcast %cst_64 : f32 to vector<8x256xf32>
    %154 = arith.addf %152, %153 : vector<8x256xf32>
    %155 = arith.mulf %154, %150 : vector<8x256xf32>
    %cst_65 = arith.constant 1.42141378 : f32
    %156 = vector.broadcast %cst_65 : f32 to vector<8x256xf32>
    %157 = arith.addf %155, %156 : vector<8x256xf32>
    %158 = arith.mulf %157, %150 : vector<8x256xf32>
    %cst_66 = arith.constant -0.284496725 : f32
    %159 = vector.broadcast %cst_66 : f32 to vector<8x256xf32>
    %160 = arith.addf %158, %159 : vector<8x256xf32>
    %161 = arith.mulf %160, %150 : vector<8x256xf32>
    %cst_67 = arith.constant 0.254829586 : f32
    %162 = vector.broadcast %cst_67 : f32 to vector<8x256xf32>
    %163 = arith.addf %161, %162 : vector<8x256xf32>
    %164 = arith.mulf %163, %150 : vector<8x256xf32>
    %cst_68 = arith.constant 0.000000e+00 : f32
    %165 = vector.broadcast %cst_68 : f32 to vector<8x256xf32>
    %166 = arith.subf %165, %144 : vector<8x256xf32>
    %167 = arith.mulf %166, %144 : vector<8x256xf32>
    %168 = math.exp %167 : vector<8x256xf32>
    %169 = arith.mulf %164, %168 : vector<8x256xf32>
    %cst_69 = arith.constant 1.000000e+00 : f32
    %170 = vector.broadcast %cst_69 : f32 to vector<8x256xf32>
    %171 = arith.subf %170, %169 : vector<8x256xf32>
    %cst_70 = arith.constant 0.000000e+00 : f32
    %172 = vector.broadcast %cst_70 : f32 to vector<8x256xf32>
    %173 = arith.cmpf oge, %143, %172 : vector<8x256xf32>
    %cst_71 = arith.constant 0.000000e+00 : f32
    %174 = vector.broadcast %cst_71 : f32 to vector<8x256xf32>
    %175 = arith.subf %174, %171 : vector<8x256xf32>
    %176 = arith.select %173, %171, %175 : vector<8x256xi1>, vector<8x256xf32>
    %cst_72 = arith.constant 1.000000e+00 : f32
    %177 = vector.broadcast %cst_72 : f32 to vector<8x256xf32>
    %178 = arith.addf %177, %176 : vector<8x256xf32>
    %179 = arith.mulf %141, %178 : vector<8x256xf32>
    %c0_73 = arith.constant 0 : index
    %c0_74 = arith.constant 0 : index
    %c0_75 = arith.constant 0 : index
    %180 = vector.load %arg12[%c0_73, %c0_74, %c0_75] : memref<1x256x128xf32, #tpu.memory_space<vmem>>, vector<1x256x128xf32>
    %181 = vector.shape_cast %180 : vector<1x256x128xf32> to vector<256x128xf32>
    %cst_76 = arith.constant dense<0.000000e+00> : vector<8x128xf32>
    %182 = tpu.matmul %179, %181, %cst_76 {dimension_numbers = #tpu.dot_dimension_numbers<[1], [0], [0], [1], [0, 0, 1, 1], [], []>} : vector<8x256xf32>, vector<256x128xf32>, vector<8x128xf32> -> vector<8x128xf32>
    %183 = arith.addf %103, %182 : vector<8x128xf32>
    %c0_77 = arith.constant 0 : index
    %c0_78 = arith.constant 0 : index
    %c0_79 = arith.constant 0 : index
    %184 = vector.load %arg13[%c0_77, %c0_78, %c0_79] : memref<1x1x128xf32, #tpu.memory_space<vmem>>, vector<1x1x128xf32>
    %185 = vector.shape_cast %184 : vector<1x1x128xf32> to vector<128xf32>
    %186 = vector.shape_cast %185 : vector<128xf32> to vector<1x128xf32>
    %187 = vector.broadcast %186 : vector<1x128xf32> to vector<8x128xf32>
    %188 = arith.addf %183, %187 : vector<8x128xf32>
    %189 = vector.shape_cast %188 : vector<8x128xf32> to vector<1x8x128xf32>
    %c0_80 = arith.constant 0 : index
    %c0_81 = arith.constant 0 : index
    %c0_82 = arith.constant 0 : index
    %190 = vector.load %arg14[%c0_80, %c0_81, %c0_82] : memref<1x8x128xf32, #tpu.memory_space<vmem>>, vector<1x8x128xf32>
    tpu.vector_store %arg14[%c0_80, %c0_81, %c0_82], %189 {strides = array<i32>} : memref<1x8x128xf32, #tpu.memory_space<vmem>>, vector<1x8x128xf32>,
    return
  }
  func.func @transform_0(%arg0: i32, %arg1: i32) -> (i32, i32, i32) {
    %c0_i32 = arith.constant 0 : i32
    %c0_i32_0 = arith.constant 0 : i32
    %c0_i32_1 = arith.constant 0 : i32
    return %arg0, %c0_i32, %c0_i32_0 : i32, i32, i32
  }
  func.func @transform_1(%arg0: i32, %arg1: i32) -> (i32, i32, i32) {
    %c0_i32 = arith.constant 0 : i32
    %c0_i32_0 = arith.constant 0 : i32
    %c0_i32_1 = arith.constant 0 : i32
    return %arg1, %c0_i32, %c0_i32_0 : i32, i32, i32
  }
  func.func @transform_2(%arg0: i32, %arg1: i32) -> (i32, i32, i32) {
    %c0_i32 = arith.constant 0 : i32
    %c0_i32_0 = arith.constant 0 : i32
    %c0_i32_1 = arith.constant 0 : i32
    return %arg1, %c0_i32, %c0_i32_0 : i32, i32, i32
  }
  func.func @transform_3(%arg0: i32, %arg1: i32) -> (i32, i32, i32) {
    %c0_i32 = arith.constant 0 : i32
    %c0_i32_0 = arith.constant 0 : i32
    %c0_i32_1 = arith.constant 0 : i32
    return %arg1, %c0_i32, %c0_i32_0 : i32, i32, i32
  }
  func.func @transform_4(%arg0: i32, %arg1: i32) -> (i32, i32, i32) {
    %c0_i32 = arith.constant 0 : i32
    %c0_i32_0 = arith.constant 0 : i32
    %c0_i32_1 = arith.constant 0 : i32
    return %arg1, %c0_i32, %c0_i32_0 : i32, i32, i32
  }
  func.func @transform_5(%arg0: i32, %arg1: i32) -> (i32, i32, i32) {
    %c0_i32 = arith.constant 0 : i32
    %c0_i32_0 = arith.constant 0 : i32
    %c0_i32_1 = arith.constant 0 : i32
    return %arg1, %c0_i32, %c0_i32_0 : i32, i32, i32
  }
  func.func @transform_6(%arg0: i32, %arg1: i32) -> (i32, i32, i32) {
    %c0_i32 = arith.constant 0 : i32
    %c0_i32_0 = arith.constant 0 : i32
    %c0_i32_1 = arith.constant 0 : i32
    return %arg1, %c0_i32, %c0_i32_0 : i32, i32, i32
  }
  func.func @transform_7(%arg0: i32, %arg1: i32) -> (i32, i32, i32) {
    %c0_i32 = arith.constant 0 : i32
    %c0_i32_0 = arith.constant 0 : i32
    %c0_i32_1 = arith.constant 0 : i32
    return %arg1, %c0_i32, %c0_i32_0 : i32, i32, i32
  }
  func.func @transform_8(%arg0: i32, %arg1: i32) -> (i32, i32, i32) {
    %c0_i32 = arith.constant 0 : i32
    %c0_i32_0 = arith.constant 0 : i32
    %c0_i32_1 = arith.constant 0 : i32
    return %arg1, %c0_i32, %c0_i32_0 : i32, i32, i32
  }
  func.func @transform_9(%arg0: i32, %arg1: i32) -> (i32, i32, i32) {
    %c0_i32 = arith.constant 0 : i32
    %c0_i32_0 = arith.constant 0 : i32
    %c0_i32_1 = arith.constant 0 : i32
    return %arg1, %c0_i32, %c0_i32_0 : i32, i32, i32
  }
  func.func @transform_10(%arg0: i32, %arg1: i32) -> (i32, i32, i32) {
    %c0_i32 = arith.constant 0 : i32
    %c0_i32_0 = arith.constant 0 : i32
    %c0_i32_1 = arith.constant 0 : i32
    return %arg1, %c0_i32, %c0_i32_0 : i32, i32, i32
  }
  func.func @transform_11(%arg0: i32, %arg1: i32) -> (i32, i32, i32) {
    %c0_i32 = arith.constant 0 : i32
    %c0_i32_0 = arith.constant 0 : i32
    %c0_i32_1 = arith.constant 0 : i32
    return %arg1, %c0_i32, %c0_i32_0 : i32, i32, i32
  }
  func.func @transform_12(%arg0: i32, %arg1: i32) -> (i32, i32, i32) {
    %c0_i32 = arith.constant 0 : i32
    %c0_i32_0 = arith.constant 0 : i32
    %c0_i32_1 = arith.constant 0 : i32
    return %arg0, %c0_i32, %c0_i32_0 : i32, i32, i32
  }
}

</mosaic_0001>

<llo_original>
// kernel: tpu_custom_call.1
$region0: #{tpu_custom_call.1}
  #allocation0 [shape = 'u32[]', space=smem, size = 0x4, offset = 0x4, fixed_abs, tag = 'smem constant byte address 0x4 - core index']
  #allocation1 [shape = 'u32[144,128]{1,0:T(1,128)}', space=vmem, size = 0x12000, scoped, tag = 'internal scratch']
  %s0 = inlined_call_operand.hbm [shape: f32[2,8,128], index: 0, kind: input, shape index: {}]
  %s1 = inlined_call_operand.vmem [shape: f32[2,1,128], index: 1, kind: input, shape index: {}]
  %s2 = inlined_call_operand.hbm [shape: f32[2,1,128], index: 2, kind: input, shape index: {}]
  %s3 = inlined_call_operand.hbm [shape: f32[2,128,384], index: 3, kind: input, shape index: {}]
  %s4 = inlined_call_operand.hbm [shape: f32[2,128,128], index: 4, kind: input, shape index: {}]
  %s5 = inlined_call_operand.vmem [shape: f32[2,1,128], index: 5, kind: input, shape index: {}]
  %s6 = inlined_call_operand.vmem [shape: f32[2,1,128], index: 6, kind: input, shape index: {}]
  %s7 = inlined_call_operand.vmem [shape: f32[2,1,128], index: 7, kind: input, shape index: {}]
  %s8 = inlined_call_operand.hbm [shape: f32[2,128,256], index: 8, kind: input, shape index: {}]
  %s9 = inlined_call_operand.vmem [shape: f32[2,1,256], index: 9, kind: input, shape index: {}]
  %s10 = inlined_call_operand.hbm [shape: f32[2,256,128], index: 10, kind: input, shape index: {}]
  %s11 = inlined_call_operand.vmem [shape: f32[2,1,128], index: 11, kind: input, shape index: {}]
  %s12 = inlined_call_operand.hbm [shape: f32[2,8,128], index: 12, kind: output, shape index: {}]
  %s13 = sld [smem:[#allocation0]]
  $region109: #{tpu_custom_call.1} parent=0
    _
  %s15 = ssub.s32 1, %s13
  %s16 = scalar_select 0, %s15, %s13
  $region1: #{tpu_custom_call.1} parent=0
    #allocation2 [shape = 'u8[8192]{0}', space=vmem, size = 0x2000, scoped, tag = 'input window, operand 0']
    #allocation3 [shape = 's32[2]{0}', space=sflag, size = 0x8, scoped, tag = 'scoped memory for tpu_custom_call.1']
    #allocation4 [shape = 's32[2]{0}', space=sflag, size = 0x8, scoped, tag = 'scoped memory for tpu_custom_call.1']
    #allocation5 [shape = 'u8[1024]{0}', space=vmem, size = 0x400, scoped, tag = 'input window, operand 2']
    #allocation6 [shape = 's32[2]{0}', space=sflag, size = 0x8, scoped, tag = 'scoped memory for tpu_custom_call.1']
    #allocation7 [shape = 'u8[393216]{0}', space=vmem, size = 0x60000, scoped, tag = 'input window, operand 3']
    #allocation8 [shape = 'u8[131072]{0}', space=vmem, size = 0x20000, scoped, tag = 'input window, operand 4']
    #allocation9 [shape = 's32[2]{0}', space=sflag, size = 0x8, scoped, tag = 'scoped memory for tpu_custom_call.1']
    #allocation10 [shape = 'u8[262144]{0}', space=vmem, size = 0x40000, scoped, tag = 'input window, operand 8']
    #allocation11 [shape = 'u8[262144]{0}', space=vmem, size = 0x40000, scoped, tag = 'input window, operand 10']
    #allocation12 [shape = 's32[2]{0}', space=sflag, size = 0x8, scoped, tag = 'scoped memory for tpu_custom_call.1']
    #allocation13 [shape = 'u8[8192]{0}', space=vmem, size = 0x2000, scoped, tag = 'output window, operand 0']
    %17 = vsyncpa [#allocation3], 0
    %s18 = scalar_lea.sflag [#allocation3], 1
    %19 = vsyncpa %s18, 0
    %20 = vsyncpa [#allocation6], 0
    %s21 = scalar_lea.sflag [#allocation6], 1
    %22 = vsyncpa %s21, 0
    %23 = vsyncpa [#allocation9], 0
    %s24 = scalar_lea.sflag [#allocation9], 1
    %25 = vsyncpa %s24, 0
    %26 = vsyncpa [#allocation12], 0
    %s27 = scalar_lea.sflag [#allocation12], 1
    %28 = vsyncpa %s27, 0
    %29 = vsyncpa [#allocation4], 0
    %s30 = scalar_lea.sflag [#allocation4], 1
    %31 = vsyncpa %s30, 0
    loop: start=0, step=1, limit=6
    $region2: #{tpu_custom_call.1} parent=1 // loop_pre_header
      _
    $region3: #{tpu_custom_call.1} parent=1 // loop_header
      %s33 = sphi 0, %s37
      %p34 = scmp.ge.s32.totalorder %s33, 6
      %s40 = sphi 0, %s52
      %s41 = sphi 0, %s48
      %s42 = sphi 0, %s40
      %s43 = sphi 0, %s41
      %s44 = sphi 0, %s42
      %s45 = sphi 0, %s43
      %s55 = sphi 0, %s57
      %s58 = sphi 0, %s55
      %s59 = sphi 0, %s58
      %s75 = sphi 0, %s59
      %s81 = sphi 0, %s83
      %s84 = sphi 0, %s81
      %s85 = sphi 0, %s84
      %s101 = sphi 0, %s85
      %s107 = sphi 0, %s109
      %s110 = sphi 0, %s107
      %s111 = sphi 0, %s110
      %s127 = sphi 0, %s111
      %s133 = sphi 0, %s135
      %s136 = sphi 0, %s133
      %s137 = sphi 0, %s136
      %s153 = sphi 0, %s137
      %s159 = sphi 0, %s161
      %s162 = sphi 0, %s159
      %s163 = sphi 0, %s162
      %s179 = sphi 0, %s163
      %s185 = sphi 0, %s187
      %s188 = sphi 0, %s185
      %s189 = sphi 0, %s188
      %s205 = sphi 0, %s189
      %s211 = sphi 0, %s213
      %s214 = sphi 0, %s211
      %s215 = sphi 0, %s214
      %s231 = sphi 0, %s215
      %s237 = sphi 0, %s239
      %s240 = sphi 0, %s237
      %s241 = sphi 0, %s240
      %s257 = sphi 0, %s241
      %s263 = sphi 0, %s265
      %s266 = sphi 0, %s263
      %s267 = sphi 0, %s266
      %s283 = sphi 0, %s267
      %s289 = sphi 0, %s291
      %s292 = sphi 0, %s289
      %s293 = sphi 0, %s292
      %s309 = sphi 0, %s293
      %s315 = sphi 0, %s317
      %s318 = sphi 0, %s315
      %s319 = sphi 0, %s318
      %s335 = sphi 0, %s319
      %s341 = sphi 0, %s343
      %s344 = sphi 0, %s341
      %s345 = sphi 0, %s344
      %s361 = sphi 0, %s345
      %s367 = sphi 0, %s369
      %s370 = sphi 0, %s367
      %s371 = sphi 0, %s370
      %s387 = sphi 0, %s371
    $region4: #{tpu_custom_call.1} parent=1 // loop_header_branch
      %36 = sbr.rel (%p34) target = $region8
    $region5: #{tpu_custom_call.1} parent=1 // loop_body
      %s38 = ssub.s32 %s33, 1
      %s39 = ssub.s32 %s33, 2
      %s46 = sadd.s32 1, %s41
      %p47 = scmp.ge.s32.totalorder %s46, 2
      %s48 = scalar_select %p47, 0, %s46
      %s49 = sadd.s32 1, %s40
      %s50 = scalar_select %p47, %s49, %s40
      %p51 = scmp.ge.s32.totalorder %s50, 2
      %s52 = scalar_select %p51, 0, %s50
      %s53 = ssub.s32 %s40, %s52
      %p54 = scmp.eq.s32.totalorder %s53, 0
      %s56 = sadd.s32 %s55, 1
      %s57 = scalar_select %p54, %s55, %s56
      %p60 = pneg %p54
      %p61 = scmp.eq.s32.totalorder %s33, 3
      %p62 = por %p60, %p61
      %p63 = scmp.ne.s32.totalorder %s55, %s58
      %p64 = scmp.eq.s32.totalorder %s33, 0
      %p65 = por %p63, %p64
      %p66 = scmp.ne.s32.totalorder %s55, %s58
      %p67 = scmp.eq.s32.totalorder %s38, 3
      %p68 = por %p66, %p67
      %p69 = scmp.ne.s32.totalorder %s58, %s59
      %p70 = scmp.eq.s32.totalorder %s38, 0
      %p71 = por %p69, %p70
      %p72 = scmp.ne.s32.totalorder %s58, %s59
      %p73 = scmp.eq.s32.totalorder %s39, 3
      %p74 = por %p72, %p73
      %p76 = scmp.ne.s32.totalorder %s59, %s75
      %p77 = scmp.eq.s32.totalorder %s39, 0
      %p78 = por %p76, %p77
      %s79 = ssub.s32 %s41, %s48
      %p80 = scmp.eq.s32.totalorder %s79, 0
      %s82 = sadd.s32 %s81, 1
      %s83 = scalar_select %p80, %s81, %s82
      %p86 = pneg %p80
      %p87 = scmp.eq.s32.totalorder %s33, 3
      %p88 = por %p86, %p87
      %p89 = scmp.ne.s32.totalorder %s81, %s84
      %p90 = scmp.eq.s32.totalorder %s33, 0
      %p91 = por %p89, %p90
      %p92 = scmp.ne.s32.totalorder %s81, %s84
      %p93 = scmp.eq.s32.totalorder %s38, 3
      %p94 = por %p92, %p93
      %p95 = scmp.ne.s32.totalorder %s84, %s85
      %p96 = scmp.eq.s32.totalorder %s38, 0
      %p97 = por %p95, %p96
      %p98 = scmp.ne.s32.totalorder %s84, %s85
      %p99 = scmp.eq.s32.totalorder %s39, 3
      %p100 = por %p98, %p99
      %p102 = scmp.ne.s32.totalorder %s85, %s101
      %p103 = scmp.eq.s32.totalorder %s39, 0
      %p104 = por %p102, %p103
      %s105 = ssub.s32 %s41, %s48
      %p106 = scmp.eq.s32.totalorder %s105, 0
      %s108 = sadd.s32 %s107, 1
      %s109 = scalar_select %p106, %s107, %s108
      %p112 = pneg %p106
      %p113 = scmp.eq.s32.totalorder %s33, 3
      %p114 = por %p112, %p113
      %p115 = scmp.ne.s32.totalorder %s107, %s110
      %p116 = scmp.eq.s32.totalorder %s33, 0
      %p117 = por %p115, %p116
      %p118 = scmp.ne.s32.totalorder %s107, %s110
      %p119 = scmp.eq.s32.totalorder %s38, 3
      %p120 = por %p118, %p119
      %p121 = scmp.ne.s32.totalorder %s110, %s111
      %p122 = scmp.eq.s32.totalorder %s38, 0
      %p123 = por %p121, %p122
      %p124 = scmp.ne.s32.totalorder %s110, %s111
      %p125 = scmp.eq.s32.totalorder %s39, 3
      %p126 = por %p124, %p125
      %p128 = scmp.ne.s32.totalorder %s111, %s127
      %p129 = scmp.eq.s32.totalorder %s39, 0
      %p130 = por %p128, %p129
      %s131 = ssub.s32 %s41, %s48
      %p132 = scmp.eq.s32.totalorder %s131, 0
      %s134 = sadd.s32 %s133, 1
      %s135 = scalar_select %p132, %s133, %s134
      %p138 = pneg %p132
      %p139 = scmp.eq.s32.totalorder %s33, 3
      %p140 = por %p138, %p139
      %p141 = scmp.ne.s32.totalorder %s133, %s136
      %p142 = scmp.eq.s32.totalorder %s33, 0
      %p143 = por %p141, %p142
      %p144 = scmp.ne.s32.totalorder %s133, %s136
      %p145 = scmp.eq.s32.totalorder %s38, 3
      %p146 = por %p144, %p145
      %p147 = scmp.ne.s32.totalorder %s136, %s137
      %p148 = scmp.eq.s32.totalorder %s38, 0
      %p149 = por %p147, %p148
      %p150 = scmp.ne.s32.totalorder %s136, %s137
      %p151 = scmp.eq.s32.totalorder %s39, 3
      %p152 = por %p150, %p151
      %p154 = scmp.ne.s32.totalorder %s137, %s153
      %p155 = scmp.eq.s32.totalorder %s39, 0
      %p156 = por %p154, %p155
      %s157 = ssub.s32 %s41, %s48
      %p158 = scmp.eq.s32.totalorder %s157, 0
      %s160 = sadd.s32 %s159, 1
      %s161 = scalar_select %p158, %s159, %s160
      %p164 = pneg %p158
      %p165 = scmp.eq.s32.totalorder %s33, 3
      %p166 = por %p164, %p165
      %p167 = scmp.ne.s32.totalorder %s159, %s162
      %p168 = scmp.eq.s32.totalorder %s33, 0
      %p169 = por %p167, %p168
      %p170 = scmp.ne.s32.totalorder %s159, %s162
      %p171 = scmp.eq.s32.totalorder %s38, 3
      %p172 = por %p170, %p171
      %p173 = scmp.ne.s32.totalorder %s162, %s163
      %p174 = scmp.eq.s32.totalorder %s38, 0
      %p175 = por %p173, %p174
      %p176 = scmp.ne.s32.totalorder %s162, %s163
      %p177 = scmp.eq.s32.totalorder %s39, 3
      %p178 = por %p176, %p177
      %p180 = scmp.ne.s32.totalorder %s163, %s179
      %p181 = scmp.eq.s32.totalorder %s39, 0
      %p182 = por %p180, %p181
      %s183 = ssub.s32 %s41, %s48
      %p184 = scmp.eq.s32.totalorder %s183, 0
      %s186 = sadd.s32 %s185, 1
      %s187 = scalar_select %p184, %s185, %s186
      %p190 = pneg %p184
      %p191 = scmp.eq.s32.totalorder %s33, 3
      %p192 = por %p190, %p191
      %p193 = scmp.ne.s32.totalorder %s185, %s188
      %p194 = scmp.eq.s32.totalorder %s33, 0
      %p195 = por %p193, %p194
      %p196 = scmp.ne.s32.totalorder %s185, %s188
      %p197 = scmp.eq.s32.totalorder %s38, 3
      %p198 = por %p196, %p197
      %p199 = scmp.ne.s32.totalorder %s188, %s189
      %p200 = scmp.eq.s32.totalorder %s38, 0
      %p201 = por %p199, %p200
      %p202 = scmp.ne.s32.totalorder %s188, %s189
      %p203 = scmp.eq.s32.totalorder %s39, 3
      %p204 = por %p202, %p203
      %p206 = scmp.ne.s32.totalorder %s189, %s205
      %p207 = scmp.eq.s32.totalorder %s39, 0
      %p208 = por %p206, %p207
      %s209 = ssub.s32 %s41, %s48
      %p210 = scmp.eq.s32.totalorder %s209, 0
      %s212 = sadd.s32 %s211, 1
      %s213 = scalar_select %p210, %s211, %s212
      %p216 = pneg %p210
      %p217 = scmp.eq.s32.totalorder %s33, 3
      %p218 = por %p216, %p217
      %p219 = scmp.ne.s32.totalorder %s211, %s214
      %p220 = scmp.eq.s32.totalorder %s33, 0
      %p221 = por %p219, %p220
      %p222 = scmp.ne.s32.totalorder %s211, %s214
      %p223 = scmp.eq.s32.totalorder %s38, 3
      %p224 = por %p222, %p223
      %p225 = scmp.ne.s32.totalorder %s214, %s215
      %p226 = scmp.eq.s32.totalorder %s38, 0
      %p227 = por %p225, %p226
      %p228 = scmp.ne.s32.totalorder %s214, %s215
      %p229 = scmp.eq.s32.totalorder %s39, 3
      %p230 = por %p228, %p229
      %p232 = scmp.ne.s32.totalorder %s215, %s231
      %p233 = scmp.eq.s32.totalorder %s39, 0
      %p234 = por %p232, %p233
      %s235 = ssub.s32 %s41, %s48
      %p236 = scmp.eq.s32.totalorder %s235, 0
      %s238 = sadd.s32 %s237, 1
      %s239 = scalar_select %p236, %s237, %s238
      %p242 = pneg %p236
      %p243 = scmp.eq.s32.totalorder %s33, 3
      %p244 = por %p242, %p243
      %p245 = scmp.ne.s32.totalorder %s237, %s240
      %p246 = scmp.eq.s32.totalorder %s33, 0
      %p247 = por %p245, %p246
      %p248 = scmp.ne.s32.totalorder %s237, %s240
      %p249 = scmp.eq.s32.totalorder %s38, 3
      %p250 = por %p248, %p249
      %p251 = scmp.ne.s32.totalorder %s240, %s241
      %p252 = scmp.eq.s32.totalorder %s38, 0
      %p253 = por %p251, %p252
      %p254 = scmp.ne.s32.totalorder %s240, %s241
      %p255 = scmp.eq.s32.totalorder %s39, 3
      %p256 = por %p254, %p255
      %p258 = scmp.ne.s32.totalorder %s241, %s257
      %p259 = scmp.eq.s32.totalorder %s39, 0
      %p260 = por %p258, %p259
      %s261 = ssub.s32 %s41, %s48
      %p262 = scmp.eq.s32.totalorder %s261, 0
      %s264 = sadd.s32 %s263, 1
      %s265 = scalar_select %p262, %s263, %s264
      %p268 = pneg %p262
      %p269 = scmp.eq.s32.totalorder %s33, 3
      %p270 = por %p268, %p269
      %p271 = scmp.ne.s32.totalorder %s263, %s266
      %p272 = scmp.eq.s32.totalorder %s33, 0
      %p273 = por %p271, %p272
      %p274 = scmp.ne.s32.totalorder %s263, %s266
      %p275 = scmp.eq.s32.totalorder %s38, 3
      %p276 = por %p274, %p275
      %p277 = scmp.ne.s32.totalorder %s266, %s267
      %p278 = scmp.eq.s32.totalorder %s38, 0
      %p279 = por %p277, %p278
      %p280 = scmp.ne.s32.totalorder %s266, %s267
      %p281 = scmp.eq.s32.totalorder %s39, 3
      %p282 = por %p280, %p281
      %p284 = scmp.ne.s32.totalorder %s267, %s283
      %p285 = scmp.eq.s32.totalorder %s39, 0
      %p286 = por %p284, %p285
      %s287 = ssub.s32 %s41, %s48
      %p288 = scmp.eq.s32.totalorder %s287, 0
      %s290 = sadd.s32 %s289, 1
      %s291 = scalar_select %p288, %s289, %s290
      %p294 = pneg %p288
      %p295 = scmp.eq.s32.totalorder %s33, 3
      %p296 = por %p294, %p295
      %p297 = scmp.ne.s32.totalorder %s289, %s292
      %p298 = scmp.eq.s32.totalorder %s33, 0
      %p299 = por %p297, %p298
      %p300 = scmp.ne.s32.totalorder %s289, %s292
      %p301 = scmp.eq.s32.totalorder %s38, 3
      %p302 = por %p300, %p301
      %p303 = scmp.ne.s32.totalorder %s292, %s293
      %p304 = scmp.eq.s32.totalorder %s38, 0
      %p305 = por %p303, %p304
      %p306 = scmp.ne.s32.totalorder %s292, %s293
      %p307 = scmp.eq.s32.totalorder %s39, 3
      %p308 = por %p306, %p307
      %p310 = scmp.ne.s32.totalorder %s293, %s309
      %p311 = scmp.eq.s32.totalorder %s39, 0
      %p312 = por %p310, %p311
      %s313 = ssub.s32 %s41, %s48
      %p314 = scmp.eq.s32.totalorder %s313, 0
      %s316 = sadd.s32 %s315, 1
      %s317 = scalar_select %p314, %s315, %s316
      %p320 = pneg %p314
      %p321 = scmp.eq.s32.totalorder %s33, 3
      %p322 = por %p320, %p321
      %p323 = scmp.ne.s32.totalorder %s315, %s318
      %p324 = scmp.eq.s32.totalorder %s33, 0
      %p325 = por %p323, %p324
      %p326 = scmp.ne.s32.totalorder %s315, %s318
      %p327 = scmp.eq.s32.totalorder %s38, 3
      %p328 = por %p326, %p327
      %p329 = scmp.ne.s32.totalorder %s318, %s319
      %p330 = scmp.eq.s32.totalorder %s38, 0
      %p331 = por %p329, %p330
      %p332 = scmp.ne.s32.totalorder %s318, %s319
      %p333 = scmp.eq.s32.totalorder %s39, 3
      %p334 = por %p332, %p333
      %p336 = scmp.ne.s32.totalorder %s319, %s335
      %p337 = scmp.eq.s32.totalorder %s39, 0
      %p338 = por %p336, %p337
      %s339 = ssub.s32 %s41, %s48
      %p340 = scmp.eq.s32.totalorder %s339, 0
      %s342 = sadd.s32 %s341, 1
      %s343 = scalar_select %p340, %s341, %s342
      %p346 = pneg %p340
      %p347 = scmp.eq.s32.totalorder %s33, 3
      %p348 = por %p346, %p347
      %p349 = scmp.ne.s32.totalorder %s341, %s344
      %p350 = scmp.eq.s32.totalorder %s33, 0
      %p351 = por %p349, %p350
      %p352 = scmp.ne.s32.totalorder %s341, %s344
      %p353 = scmp.eq.s32.totalorder %s38, 3
      %p354 = por %p352, %p353
      %p355 = scmp.ne.s32.totalorder %s344, %s345
      %p356 = scmp.eq.s32.totalorder %s38, 0
      %p357 = por %p355, %p356
      %p358 = scmp.ne.s32.totalorder %s344, %s345
      %p359 = scmp.eq.s32.totalorder %s39, 3
      %p360 = por %p358, %p359
      %p362 = scmp.ne.s32.totalorder %s345, %s361
      %p363 = scmp.eq.s32.totalorder %s39, 0
      %p364 = por %p362, %p363
      %s365 = ssub.s32 %s40, %s52
      %p366 = scmp.eq.s32.totalorder %s365, 0
      %s368 = sadd.s32 %s367, 1
      %s369 = scalar_select %p366, %s367, %s368
      %p372 = pneg %p366
      %p373 = scmp.eq.s32.totalorder %s33, 3
      %p374 = por %p372, %p373
      %p375 = scmp.ne.s32.totalorder %s367, %s370
      %p376 = scmp.eq.s32.totalorder %s33, 0
      %p377 = por %p375, %p376
      %p378 = scmp.ne.s32.totalorder %s367, %s370
      %p379 = scmp.eq.s32.totalorder %s38, 3
      %p380 = por %p378, %p379
      %p381 = scmp.ne.s32.totalorder %s370, %s371
      %p382 = scmp.eq.s32.totalorder %s38, 0
      %p383 = por %p381, %p382
      %p384 = scmp.ne.s32.totalorder %s370, %s371
      %p385 = scmp.eq.s32.totalorder %s39, 3
      %p386 = por %p384, %p385
      %p388 = scmp.ne.s32.totalorder %s371, %s387
      %p389 = scmp.eq.s32.totalorder %s39, 0
      %p390 = por %p388, %p389
      %p391 = scmp.le.s32.totalorder 1, %s33
      %p392 = scmp.lt.s32.totalorder %s33, 5
      %p393 = pnand %p391, %p392
      %p394 = pneg %p393
      // Predicated region
      $region9: #{tpu_custom_call.1} parent=5 // pred_check
        _
      $region10: #{tpu_custom_call.1} parent=5 // pred_check_branch
        %396 = sbr.rel (%p393) target = $region12
      $region11: #{tpu_custom_call.1} parent=5 // pred_region
        %s397 = ssub.s32 %s33, 1
      $region12: #{tpu_custom_call.1} parent=5 // pred_fallthru
        _
      %p398 = scmp.lt.s32.totalorder %s33, 4
      // Predicated region
      $region13: #{tpu_custom_call.1} parent=5 // pred_check
        %p399 = pneg %p398
      $region14: #{tpu_custom_call.1} parent=5 // pred_check_branch
        %401 = sbr.rel (%p399) target = $region16
      $region15: #{tpu_custom_call.1} parent=5 // pred_region
        // Predicated region
        $region17: #{tpu_custom_call.1} parent=15 // pred_check
          %p402 = pneg %p65
        $region18: #{tpu_custom_call.1} parent=15 // pred_check_branch
          %404 = sbr.rel (%p402) target = $region20
        $region19: #{tpu_custom_call.1} parent=15 // pred_region
          %s405 = sand.u32 %s55, 1
          %s406 = scalar_lea.sflag [#allocation3], %s405
          %s407 = sand.u32 %s55, 1
          %s408 = smul.addr %s407, 8
          %s409 = scalar_lea.vmem [#allocation2], %s408
          %s411 = ssub.s32 128, 128
          %412 = vsyncadd %s406, %s411
          %s413 = smul.addr %s40, 128
          %s414 = scalar_lea.hbm %s0, %s413
          %s416 = sshll.u32 %s409, 4
          %s417 = int_to_ptr.vmem [resolvable:$true] %s416
          %419 = dma.hbm_to_vmem [thread:$0]  %s414, 128, %s417, %s406
        $region20: #{tpu_custom_call.1} parent=15 // pred_fallthru
          _
        // Predicated region
        $region21: #{tpu_custom_call.1} parent=15 // pred_check
          %p420 = pneg %p91
        $region22: #{tpu_custom_call.1} parent=15 // pred_check_branch
          %422 = sbr.rel (%p420) target = $region24
        $region23: #{tpu_custom_call.1} parent=15 // pred_region
          %p423 = scmp.lt.s32.totalorder %s41, 1
          %s424 = scalar_select %p423, %s41, 1
          %s425 = scalar_lea.vmem %s1, %s424
        $region24: #{tpu_custom_call.1} parent=15 // pred_fallthru
          _
        // Predicated region
        $region25: #{tpu_custom_call.1} parent=15 // pred_check
          %p426 = pneg %p117
        $region26: #{tpu_custom_call.1} parent=15 // pred_check_branch
          %428 = sbr.rel (%p426) target = $region28
        $region27: #{tpu_custom_call.1} parent=15 // pred_region
          %s429 = sand.u32 %s33, 1
          %s430 = scalar_lea.sflag [#allocation6], %s429
          %s431 = sand.u32 %s107, 1
          %s432 = scalar_lea.vmem [#allocation5], %s431
          %s434 = ssub.s32 16, 16
          %435 = vsyncadd %s430, %s434
          %s436 = smul.addr %s41, 16
          %s437 = scalar_lea.hbm %s2, %s436
          %s439 = sshll.u32 %s432, 4
          %s440 = int_to_ptr.vmem [resolvable:$true] %s439
          %442 = dma.hbm_to_vmem [thread:$0]  %s437, 16, %s440, %s430
        $region28: #{tpu_custom_call.1} parent=15 // pred_fallthru
          _
        // Predicated region
        $region29: #{tpu_custom_call.1} parent=15 // pred_check
          %p443 = pneg %p143
        $region30: #{tpu_custom_call.1} parent=15 // pred_check_branch
          %445 = sbr.rel (%p443) target = $region32
        $region31: #{tpu_custom_call.1} parent=15 // pred_region
          %s446 = sand.u32 %s33, 1
          %s447 = scalar_lea.sflag [#allocation6], %s446
          %s448 = sand.u32 %s133, 1
          %s449 = smul.addr %s448, 384
          %s450 = scalar_lea.vmem [#allocation7], %s449
          %s452 = ssub.s32 6144, 6144
          %453 = vsyncadd %s447, %s452
          %s454 = smul.addr %s41, 48
          %s455 = smul.addr %s454, 128
          %s456 = scalar_lea.hbm %s3, %s455
          %s457 = sshll.u32 %s450, 4
          %s458 = int_to_ptr.vmem [resolvable:$true] %s457
          %463 = dma.hbm_to_vmem [thread:$0]  %s456, 6144, %s458, %s447, 384, 384, 24
        $region32: #{tpu_custom_call.1} parent=15 // pred_fallthru
          _
        // Predicated region
        $region33: #{tpu_custom_call.1} parent=15 // pred_check
          %p464 = pneg %p169
        $region34: #{tpu_custom_call.1} parent=15 // pred_check_branch
          %466 = sbr.rel (%p464) target = $region36
        $region35: #{tpu_custom_call.1} parent=15 // pred_region
          %s467 = sand.u32 %s33, 1
          %s468 = scalar_lea.sflag [#allocation9], %s467
          %s469 = sand.u32 %s159, 1
          %s470 = smul.addr %s469, 128
          %s471 = scalar_lea.vmem [#allocation8], %s470
          %s473 = ssub.s32 2048, 2048
          %474 = vsyncadd %s468, %s473
          %s475 = smul.addr %s41, 16
          %s476 = smul.addr %s475, 128
          %s477 = scalar_lea.hbm %s4, %s476
          %s478 = sshll.u32 %s471, 4
          %s479 = int_to_ptr.vmem [resolvable:$true] %s478
          %484 = dma.hbm_to_vmem [thread:$0]  %s477, 2048, %s479, %s468, 128, 128, 8
        $region36: #{tpu_custom_call.1} parent=15 // pred_fallthru
          _
        // Predicated region
        $region37: #{tpu_custom_call.1} parent=15 // pred_check
          %p485 = pneg %p195
        $region38: #{tpu_custom_call.1} parent=15 // pred_check_branch
          %487 = sbr.rel (%p485) target = $region40
        $region39: #{tpu_custom_call.1} parent=15 // pred_region
          %p488 = scmp.lt.s32.totalorder %s41, 1
          %s489 = scalar_select %p488, %s41, 1
          %s490 = scalar_lea.vmem %s5, %s489
        $region40: #{tpu_custom_call.1} parent=15 // pred_fallthru
          _
        // Predicated region
        $region41: #{tpu_custom_call.1} parent=15 // pred_check
          %p491 = pneg %p221
        $region42: #{tpu_custom_call.1} parent=15 // pred_check_branch
          %493 = sbr.rel (%p491) target = $region44
        $region43: #{tpu_custom_call.1} parent=15 // pred_region
          %p494 = scmp.lt.s32.totalorder %s41, 1
          %s495 = scalar_select %p494, %s41, 1
          %s496 = scalar_lea.vmem %s6, %s495
        $region44: #{tpu_custom_call.1} parent=15 // pred_fallthru
          _
        // Predicated region
        $region45: #{tpu_custom_call.1} parent=15 // pred_check
          %p497 = pneg %p247
        $region46: #{tpu_custom_call.1} parent=15 // pred_check_branch
          %499 = sbr.rel (%p497) target = $region48
        $region47: #{tpu_custom_call.1} parent=15 // pred_region
          %p500 = scmp.lt.s32.totalorder %s41, 1
          %s501 = scalar_select %p500, %s41, 1
          %s502 = scalar_lea.vmem %s7, %s501
        $region48: #{tpu_custom_call.1} parent=15 // pred_fallthru
          _
        // Predicated region
        $region49: #{tpu_custom_call.1} parent=15 // pred_check
          %p503 = pneg %p273
        $region50: #{tpu_custom_call.1} parent=15 // pred_check_branch
          %505 = sbr.rel (%p503) target = $region52
        $region51: #{tpu_custom_call.1} parent=15 // pred_region
          %s506 = sand.u32 %s33, 1
          %s507 = scalar_lea.sflag [#allocation9], %s506
          %s508 = sand.u32 %s263, 1
          %s509 = smul.addr %s508, 256
          %s510 = scalar_lea.vmem [#allocation10], %s509
          %s512 = ssub.s32 4096, 4096
          %513 = vsyncadd %s507, %s512
          %s514 = smul.addr %s41, 32
          %s515 = smul.addr %s514, 128
          %s516 = scalar_lea.hbm %s8, %s515
          %s517 = sshll.u32 %s510, 4
          %s518 = int_to_ptr.vmem [resolvable:$true] %s517
          %523 = dma.hbm_to_vmem [thread:$0]  %s516, 4096, %s518, %s507, 256, 256, 16
        $region52: #{tpu_custom_call.1} parent=15 // pred_fallthru
          _
        // Predicated region
        $region53: #{tpu_custom_call.1} parent=15 // pred_check
          %p524 = pneg %p299
        $region54: #{tpu_custom_call.1} parent=15 // pred_check_branch
          %526 = sbr.rel (%p524) target = $region56
        $region55: #{tpu_custom_call.1} parent=15 // pred_region
          %p527 = scmp.lt.s32.totalorder %s41, 1
          %s528 = scalar_select %p527, %s41, 1
          %s529 = smul.addr %s528, 2
          %s530 = scalar_lea.vmem %s9, %s529
        $region56: #{tpu_custom_call.1} parent=15 // pred_fallthru
          _
        // Predicated region
        $region57: #{tpu_custom_call.1} parent=15 // pred_check
          %p531 = pneg %p325
        $region58: #{tpu_custom_call.1} parent=15 // pred_check_branch
          %533 = sbr.rel (%p531) target = $region60
        $region59: #{tpu_custom_call.1} parent=15 // pred_region
          %s534 = sand.u32 %s315, 1
          %s535 = scalar_lea.sflag [#allocation12], %s534
          %s536 = sand.u32 %s315, 1
          %s537 = smul.addr %s536, 256
          %s538 = scalar_lea.vmem [#allocation11], %s537
          %s540 = ssub.s32 4096, 4096
          %541 = vsyncadd %s535, %s540
          %s542 = smul.addr %s41, 32
          %s543 = smul.addr %s542, 128
          %s544 = scalar_lea.hbm %s10, %s543
          %s545 = sshll.u32 %s538, 4
          %s546 = int_to_ptr.vmem [resolvable:$true] %s545
          %551 = dma.hbm_to_vmem [thread:$0]  %s544, 4096, %s546, %s535, 128, 128, 8
        $region60: #{tpu_custom_call.1} parent=15 // pred_fallthru
          _
        // Predicated region
        $region61: #{tpu_custom_call.1} parent=15 // pred_check
          %p552 = pneg %p351
        $region62: #{tpu_custom_call.1} parent=15 // pred_check_branch
          %554 = sbr.rel (%p552) target = $region64
        $region63: #{tpu_custom_call.1} parent=15 // pred_region
          %p555 = scmp.lt.s32.totalorder %s41, 1
          %s556 = scalar_select %p555, %s41, 1
          %s557 = scalar_lea.vmem %s11, %s556
        $region64: #{tpu_custom_call.1} parent=15 // pred_fallthru
          _
      $region16: #{tpu_custom_call.1} parent=5 // pred_fallthru
        _
      %p558 = scmp.le.s32.totalorder 1, %s33
      %p559 = scmp.lt.s32.totalorder %s33, 5
      %p560 = pnand %p558, %p559
      %p561 = pneg %p560
      // Predicated region
      $region65: #{tpu_custom_call.1} parent=5 // pred_check
        _
      $region66: #{tpu_custom_call.1} parent=5 // pred_check_branch
        %563 = sbr.rel (%p560) target = $region68
      $region67: #{tpu_custom_call.1} parent=5 // pred_region
        %s564 = ssub.s32 %s33, 1
        %s565 = sand.u32 %s58, 1
        %s566 = scalar_lea.sflag [#allocation3], %s565
        %s567 = sand.u32 %s58, 1
        %s568 = smul.addr %s567, 8
        %s569 = scalar_lea.vmem [#allocation2], %s568
        // Predicated region
        $region69: #{tpu_custom_call.1} parent=67 // pred_check
          %p570 = pneg %p71
        $region70: #{tpu_custom_call.1} parent=67 // pred_check_branch
          %572 = sbr.rel (%p570) target = $region72
        $region71: #{tpu_custom_call.1} parent=67 // pred_region
          %573 = dma.done %s566, 128
        $region72: #{tpu_custom_call.1} parent=67 // pred_fallthru
          _
        %s574 = sand.u32 %s38, 1
        %s575 = scalar_lea.sflag [#allocation6], %s574
        %s576 = sand.u32 %s110, 1
        %s577 = scalar_lea.vmem [#allocation5], %s576
        // Predicated region
        $region73: #{tpu_custom_call.1} parent=67 // pred_check
          %p578 = pneg %p123
        $region74: #{tpu_custom_call.1} parent=67 // pred_check_branch
          %580 = sbr.rel (%p578) target = $region76
        $region75: #{tpu_custom_call.1} parent=67 // pred_region
          %581 = dma.done %s575, 16
        $region76: #{tpu_custom_call.1} parent=67 // pred_fallthru
          _
        %s582 = sand.u32 %s38, 1
        %s583 = scalar_lea.sflag [#allocation6], %s582
        %s584 = sand.u32 %s136, 1
        %s585 = smul.addr %s584, 384
        %s586 = scalar_lea.vmem [#allocation7], %s585
        // Predicated region
        $region77: #{tpu_custom_call.1} parent=67 // pred_check
          %p587 = pneg %p149
        $region78: #{tpu_custom_call.1} parent=67 // pred_check_branch
          %589 = sbr.rel (%p587) target = $region80
        $region79: #{tpu_custom_call.1} parent=67 // pred_region
          %590 = dma.done %s583, 6144
        $region80: #{tpu_custom_call.1} parent=67 // pred_fallthru
          _
        %s591 = sand.u32 %s38, 1
        %s592 = scalar_lea.sflag [#allocation9], %s591
        %s593 = sand.u32 %s162, 1
        %s594 = smul.addr %s593, 128
        %s595 = scalar_lea.vmem [#allocation8], %s594
        // Predicated region
        $region81: #{tpu_custom_call.1} parent=67 // pred_check
          %p596 = pneg %p175
        $region82: #{tpu_custom_call.1} parent=67 // pred_check_branch
          %598 = sbr.rel (%p596) target = $region84
        $region83: #{tpu_custom_call.1} parent=67 // pred_region
          %599 = dma.done %s592, 2048
        $region84: #{tpu_custom_call.1} parent=67 // pred_fallthru
          _
        %s600 = sand.u32 %s38, 1
        %s601 = scalar_lea.sflag [#allocation9], %s600
        %s602 = sand.u32 %s266, 1
        %s603 = smul.addr %s602, 256
        %s604 = scalar_lea.vmem [#allocation10], %s603
        // Predicated region
        $region85: #{tpu_custom_call.1} parent=67 // pred_check
          %p605 = pneg %p279
        $region86: #{tpu_custom_call.1} parent=67 // pred_check_branch
          %607 = sbr.rel (%p605) target = $region88
        $region87: #{tpu_custom_call.1} parent=67 // pred_region
          %608 = dma.done %s601, 4096
        $region88: #{tpu_custom_call.1} parent=67 // pred_fallthru
          _
        %s609 = sand.u32 %s318, 1
        %s610 = scalar_lea.sflag [#allocation12], %s609
        %s611 = sand.u32 %s318, 1
        %s612 = smul.addr %s611, 256
        %s613 = scalar_lea.vmem [#allocation11], %s612
        // Predicated region
        $region89: #{tpu_custom_call.1} parent=67 // pred_check
          %p614 = pneg %p331
        $region90: #{tpu_custom_call.1} parent=67 // pred_check_branch
          %616 = sbr.rel (%p614) target = $region92
        $region91: #{tpu_custom_call.1} parent=67 // pred_region
          %617 = dma.done %s610, 4096
        $region92: #{tpu_custom_call.1} parent=67 // pred_fallthru
          _
        %s618 = sand.u32 %s58, 1
        %s619 = scalar_lea.sflag [#allocation3], %s618
        %s620 = sand.u32 %s58, 1
        %s621 = smul.addr %s620, 8
        %s622 = scalar_lea.vmem [#allocation2], %s621
        %p623 = pneg %p71
        %p624 = pneg %p68
        %p625 = scmp.lt.s32.totalorder %s43, 1
        %s626 = scalar_select %p625, %s43, 1
        %s627 = scalar_lea.vmem %s1, %s626
        %p628 = pneg %p97
        %p629 = pneg %p94
        %s630 = sand.u32 %s38, 1
        %s631 = scalar_lea.sflag [#allocation6], %s630
        %s632 = sand.u32 %s110, 1
        %s633 = scalar_lea.vmem [#allocation5], %s632
        %p634 = pneg %p123
        %p635 = pneg %p120
        %s636 = sand.u32 %s38, 1
        %s637 = scalar_lea.sflag [#allocation6], %s636
        %s638 = sand.u32 %s136, 1
        %s639 = smul.addr %s638, 384
        %s640 = scalar_lea.vmem [#allocation7], %s639
        %p641 = pneg %p149
        %p642 = pneg %p146
        %s643 = sand.u32 %s38, 1
        %s644 = scalar_lea.sflag [#allocation9], %s643
        %s645 = sand.u32 %s162, 1
        %s646 = smul.addr %s645, 128
        %s647 = scalar_lea.vmem [#allocation8], %s646
        %p648 = pneg %p175
        %p649 = pneg %p172
        %p650 = scmp.lt.s32.totalorder %s43, 1
        %s651 = scalar_select %p650, %s43, 1
        %s652 = scalar_lea.vmem %s5, %s651
        %p653 = pneg %p201
        %p654 = pneg %p198
        %p655 = scmp.lt.s32.totalorder %s43, 1
        %s656 = scalar_select %p655, %s43, 1
        %s657 = scalar_lea.vmem %s6, %s656
        %p658 = pneg %p227
        %p659 = pneg %p224
        %p660 = scmp.lt.s32.totalorder %s43, 1
        %s661 = scalar_select %p660, %s43, 1
        %s662 = scalar_lea.vmem %s7, %s661
        %p663 = pneg %p253
        %p664 = pneg %p250
        %s665 = sand.u32 %s38, 1
        %s666 = scalar_lea.sflag [#allocation9], %s665
        %s667 = sand.u32 %s266, 1
        %s668 = smul.addr %s667, 256
        %s669 = scalar_lea.vmem [#allocation10], %s668
        %p670 = pneg %p279
        %p671 = pneg %p276
        %p672 = scmp.lt.s32.totalorder %s43, 1
        %s673 = scalar_select %p672, %s43, 1
        %s674 = smul.addr %s673, 2
        %s675 = scalar_lea.vmem %s9, %s674
        %p676 = pneg %p305
        %p677 = pneg %p302
        %s678 = sand.u32 %s318, 1
        %s679 = scalar_lea.sflag [#allocation12], %s678
        %s680 = sand.u32 %s318, 1
        %s681 = smul.addr %s680, 256
        %s682 = scalar_lea.vmem [#allocation11], %s681
        %p683 = pneg %p331
        %p684 = pneg %p328
        %p685 = scmp.lt.s32.totalorder %s43, 1
        %s686 = scalar_select %p685, %s43, 1
        %s687 = scalar_lea.vmem %s11, %s686
        %p688 = pneg %p357
        %p689 = pneg %p354
        %p690 = pneg %p383
        %p691 = pneg %p380
        %s692 = sand.u32 %s370, 1
        %s693 = scalar_lea.sflag [#allocation4], %s692
        %s694 = sand.u32 %s370, 1
        %s695 = smul.addr %s694, 8
        %s696 = scalar_lea.vmem [#allocation13], %s695
        %p697 = scmp.lt.s32.totalorder %s43, 1
        %s698 = scalar_select %p697, %s43, 1
        %s699 = scalar_lea.vmem %s1, %s698
        %p700 = scmp.lt.s32.totalorder %s43, 1
        %s701 = scalar_select %p700, %s43, 1
        %s702 = scalar_lea.vmem %s5, %s701
        %p703 = scmp.lt.s32.totalorder %s43, 1
        %s704 = scalar_select %p703, %s43, 1
        %s705 = scalar_lea.vmem %s6, %s704
        %p706 = scmp.lt.s32.totalorder %s43, 1
        %s707 = scalar_select %p706, %s43, 1
        %s708 = scalar_lea.vmem %s7, %s707
        %p709 = scmp.lt.s32.totalorder %s43, 1
        %s710 = scalar_select %p709, %s43, 1
        %s711 = smul.addr %s710, 2
        %s712 = scalar_lea.vmem %s9, %s711
        %p713 = scmp.lt.s32.totalorder %s43, 1
        %s714 = scalar_select %p713, %s43, 1
        %s715 = scalar_lea.vmem %s11, %s714
        %p716 = scmp.eq.s32.totalorder %s43, 0
        // Predicated region
        $region93: #{tpu_custom_call.1} parent=67 // pred_check
          %p717 = pneg %p716
        $region94: #{tpu_custom_call.1} parent=67 // pred_check_branch
          %719 = sbr.rel (%p717) target = $region96
        $region95: #{tpu_custom_call.1} parent=67 // pred_region
          %v720 = vld [vmem:[%s569] sm:$0xff]
          %721 = vst [vmem:[%s696] sm:$0xff] %v720
        $region96: #{tpu_custom_call.1} parent=67 // pred_fallthru
          _
        %v722 = vld [vmem:[%s696] sm:$0xff]
        %v723 = vld [vmem:[%s699] sm:$0x1]
        %v724 = vld [vmem:[%s577] sm:$0x1]
        %725 = vadd.xlane.f32.xlu0 %v722
        %v726 = vpop.xlane.xlu0 %725
        %v727 = vrcp.pop 128.0
        %v728 = vmul.f32 %v726, %v727
        %v729 = vsub.f32 %v722, %v728
        %v730 = vmul.f32 %v729, %v729
        %731 = vadd.xlane.f32.xlu0 %v730
        %v732 = vpop.xlane.xlu0 %731
        %v733 = vmul.f32 %v732, %v727
        %v734 = vadd.f32 %v733, 1e-05
        %v735 = vrsqrt.pop %v734
        %v736 = vmul.f32 %v729, %v735
        %v738 = vlaneseq
        %v739 = vshrl.u32 %v738, 7
        %v740 = vsub.s32 0, %v739
        %v741 = vrot.slane %v723, %v740
        %v743 = vmul.f32 %v736, %v741
        %v745 = vlaneseq
        %v746 = vshrl.u32 %v745, 7
        %v747 = vsub.s32 0, %v746
        %v748 = vrot.slane %v724, %v747
        %v750 = vadd.f32 %v743, %v748
        %v751 = vld [vmem:[%s586] sm:$0xff]
        %v752 = vld [vmem:[%s586 + $0x8] sm:$0xff]
        %v753 = vld [vmem:[%s586 + $0x10] sm:$0xff]
        %v754 = vld [vmem:[%s586 + $0x18] sm:$0xff]
        %v755 = vld [vmem:[%s586 + $0x20] sm:$0xff]
        %v756 = vld [vmem:[%s586 + $0x28] sm:$0xff]
        %v757 = vld [vmem:[%s586 + $0x30] sm:$0xff]
        %v758 = vld [vmem:[%s586 + $0x38] sm:$0xff]
        %v759 = vld [vmem:[%s586 + $0x40] sm:$0xff]
        %v760 = vld [vmem:[%s586 + $0x48] sm:$0xff]
        %v761 = vld [vmem:[%s586 + $0x50] sm:$0xff]
        %v762 = vld [vmem:[%s586 + $0x58] sm:$0xff]
        %v763 = vld [vmem:[%s586 + $0x60] sm:$0xff]
        %v764 = vld [vmem:[%s586 + $0x68] sm:$0xff]
        %v765 = vld [vmem:[%s586 + $0x70] sm:$0xff]
        %v766 = vld [vmem:[%s586 + $0x78] sm:$0xff]
        %v767 = vld [vmem:[%s586 + $0x80] sm:$0xff]
        %v768 = vld [vmem:[%s586 + $0x88] sm:$0xff]
        %v769 = vld [vmem:[%s586 + $0x90] sm:$0xff]
        %v770 = vld [vmem:[%s586 + $0x98] sm:$0xff]
        %v771 = vld [vmem:[%s586 + $0xa0] sm:$0xff]
        %v772 = vld [vmem:[%s586 + $0xa8] sm:$0xff]
        %v773 = vld [vmem:[%s586 + $0xb0] sm:$0xff]
        %v774 = vld [vmem:[%s586 + $0xb8] sm:$0xff]
        %v775 = vld [vmem:[%s586 + $0xc0] sm:$0xff]
        %v776 = vld [vmem:[%s586 + $0xc8] sm:$0xff]
        %v777 = vld [vmem:[%s586 + $0xd0] sm:$0xff]
        %v778 = vld [vmem:[%s586 + $0xd8] sm:$0xff]
        %v779 = vld [vmem:[%s586 + $0xe0] sm:$0xff]
        %v780 = vld [vmem:[%s586 + $0xe8] sm:$0xff]
        %v781 = vld [vmem:[%s586 + $0xf0] sm:$0xff]
        %v782 = vld [vmem:[%s586 + $0xf8] sm:$0xff]
        %v783 = vld [vmem:[%s586 + $0x100] sm:$0xff]
        %v784 = vld [vmem:[%s586 + $0x108] sm:$0xff]
        %v785 = vld [vmem:[%s586 + $0x110] sm:$0xff]
        %v786 = vld [vmem:[%s586 + $0x118] sm:$0xff]
        %v787 = vld [vmem:[%s586 + $0x120] sm:$0xff]
        %v788 = vld [vmem:[%s586 + $0x128] sm:$0xff]
        %v789 = vld [vmem:[%s586 + $0x130] sm:$0xff]
        %v790 = vld [vmem:[%s586 + $0x138] sm:$0xff]
        %v791 = vld [vmem:[%s586 + $0x140] sm:$0xff]
        %v792 = vld [vmem:[%s586 + $0x148] sm:$0xff]
        %v793 = vld [vmem:[%s586 + $0x150] sm:$0xff]
        %v794 = vld [vmem:[%s586 + $0x158] sm:$0xff]
        %v795 = vld [vmem:[%s586 + $0x160] sm:$0xff]
        %v796 = vld [vmem:[%s586 + $0x168] sm:$0xff]
        %v797 = vld [vmem:[%s586 + $0x170] sm:$0xff]
        %v798 = vld [vmem:[%s586 + $0x178] sm:$0xff]
        %799 = vmatprep.subr.mxu0 %v752
        %800 = vmatpush1.msra.mxu0 %v751
        %801 = vmatprep.subr.mxu0 %v755
        %802 = vmatpush1.msra.mxu0 %v754
        %803 = vmatprep.subr.mxu0 %v758
        %804 = vmatpush1.msra.mxu0 %v757
        %805 = vmatprep.subr.mxu0 %v761
        %806 = vmatpush1.msra.mxu0 %v760
        %807 = vmatprep.subr.mxu0 %v764
        %808 = vmatpush1.msra.mxu0 %v763
        %809 = vmatprep.subr.mxu0 %v767
        %810 = vmatpush1.msra.mxu0 %v766
        %811 = vmatprep.subr.mxu0 %v770
        %812 = vmatpush1.msra.mxu0 %v769
        %813 = vmatprep.subr.mxu0 %v773
        %814 = vmatpush1.msra.mxu0 %v772
        %815 = vmatprep.subr.mxu0 %v776
        %816 = vmatpush1.msra.mxu0 %v775
        %817 = vmatprep.subr.mxu0 %v779
        %818 = vmatpush1.msra.mxu0 %v778
        %819 = vmatprep.subr.mxu0 %v782
        %820 = vmatpush1.msra.mxu0 %v781
        %821 = vmatprep.subr.mxu0 %v785
        %822 = vmatpush1.msra.mxu0 %v784
        %823 = vmatprep.subr.mxu0 %v788
        %824 = vmatpush1.msra.mxu0 %v787
        %825 = vmatprep.subr.mxu0 %v791
        %826 = vmatpush1.msra.mxu0 %v790
        %827 = vmatprep.subr.mxu0 %v794
        %828 = vmatpush1.msra.mxu0 %v793
        %829 = vmatprep.subr.mxu0 %v797
        %830 = vmatpush1.msra.mxu0 %v796
        %831 = vmatprep.subr.mxu0 0.0
        %832 = vmatpush1.msra.mxu0 0.0
        %833 = vmatprep.subr.mxu0 0.0
        %834 = vmatpush1.msra.mxu0 0.0
        %835 = vmatprep.subr.mxu0 0.0
        %836 = vmatpush1.msra.mxu0 0.0
        %837 = vmatprep.subr.mxu0 0.0
        %838 = vmatpush1.msra.mxu0 0.0
        %839 = vmatprep.subr.mxu0 0.0
        %840 = vmatpush1.msra.mxu0 0.0
        %841 = vmatprep.subr.mxu0 0.0
        %842 = vmatpush1.msra.mxu0 0.0
        %843 = vmatprep.subr.mxu0 0.0
        %844 = vmatpush1.msra.mxu0 0.0
        %845 = vmatprep.subr.mxu0 0.0
        %846 = vmatpush1.msra.mxu0 0.0
        %847 = vmatprep.subr.mxu0 0.0
        %848 = vmatpush1.msra.mxu0 0.0
        %849 = vmatprep.subr.mxu0 0.0
        %850 = vmatpush1.msra.mxu0 0.0
        %851 = vmatprep.subr.mxu0 0.0
        %852 = vmatpush1.msra.mxu0 0.0
        %853 = vmatprep.subr.mxu0 0.0
        %854 = vmatpush1.msra.mxu0 0.0
        %855 = vmatprep.subr.mxu0 0.0
        %856 = vmatpush1.msra.mxu0 0.0
        %857 = vmatprep.subr.mxu0 0.0
        %858 = vmatpush1.msra.mxu0 0.0
        %859 = vmatprep.subr.mxu0 0.0
        %860 = vmatpush1.msra.mxu0 0.0
        %861 = vmatprep.subr.mxu0 0.0
        %862 = vmatpush1.msra.mxu0 0.0
        %863 = vmatprep.mubr.f32.mxu0 0.0
        %864 = vmatmul.mubr.f32.gmra.mrb[0].mxu0 %v750
        %v865 = vpop.f32.mrb[0].mxu0
        %v866 = vadd.f32 0.0, %v865
        %v867 = vpop.f32.mrb[0].mxu0
        %v868 = vadd.f32 0.0, %v867
        %869 = vdwg.mxu0
        %870 = vmatprep.subr.mxu0 0.0
        %871 = vmatpush1.msra.mxu0 %v753
        %872 = vmatprep.subr.mxu0 0.0
        %873 = vmatpush1.msra.mxu0 %v756
        %874 = vmatprep.subr.mxu0 0.0
        %875 = vmatpush1.msra.mxu0 %v759
        %876 = vmatprep.subr.mxu0 0.0
        %877 = vmatpush1.msra.mxu0 %v762
        %878 = vmatprep.subr.mxu0 0.0
        %879 = vmatpush1.msra.mxu0 %v765
        %880 = vmatprep.subr.mxu0 0.0
        %881 = vmatpush1.msra.mxu0 %v768
        %882 = vmatprep.subr.mxu0 0.0
        %883 = vmatpush1.msra.mxu0 %v771
        %884 = vmatprep.subr.mxu0 0.0
        %885 = vmatpush1.msra.mxu0 %v774
        %886 = vmatprep.subr.mxu0 0.0
        %887 = vmatpush1.msra.mxu0 %v777
        %888 = vmatprep.subr.mxu0 0.0
        %889 = vmatpush1.msra.mxu0 %v780
        %890 = vmatprep.subr.mxu0 0.0
        %891 = vmatpush1.msra.mxu0 %v783
        %892 = vmatprep.subr.mxu0 0.0
        %893 = vmatpush1.msra.mxu0 %v786
        %894 = vmatprep.subr.mxu0 0.0
        %895 = vmatpush1.msra.mxu0 %v789
        %896 = vmatprep.subr.mxu0 0.0
        %897 = vmatpush1.msra.mxu0 %v792
        %898 = vmatprep.subr.mxu0 0.0
        %899 = vmatpush1.msra.mxu0 %v795
        %900 = vmatprep.subr.mxu0 0.0
        %901 = vmatpush1.msra.mxu0 %v798
        %902 = vmatprep.subr.mxu0 0.0
        %903 = vmatpush1.msra.mxu0 0.0
        %904 = vmatprep.subr.mxu0 0.0
        %905 = vmatpush1.msra.mxu0 0.0
        %906 = vmatprep.subr.mxu0 0.0
        %907 = vmatpush1.msra.mxu0 0.0
        %908 = vmatprep.subr.mxu0 0.0
        %909 = vmatpush1.msra.mxu0 0.0
        %910 = vmatprep.subr.mxu0 0.0
        %911 = vmatpush1.msra.mxu0 0.0
        %912 = vmatprep.subr.mxu0 0.0
        %913 = vmatpush1.msra.mxu0 0.0
        %914 = vmatprep.subr.mxu0 0.0
        %915 = vmatpush1.msra.mxu0 0.0
        %916 = vmatprep.subr.mxu0 0.0
        %917 = vmatpush1.msra.mxu0 0.0
        %918 = vmatprep.subr.mxu0 0.0
        %919 = vmatpush1.msra.mxu0 0.0
        %920 = vmatprep.subr.mxu0 0.0
        %921 = vmatpush1.msra.mxu0 0.0
        %922 = vmatprep.subr.mxu0 0.0
        %923 = vmatpush1.msra.mxu0 0.0
        %924 = vmatprep.subr.mxu0 0.0
        %925 = vmatpush1.msra.mxu0 0.0
        %926 = vmatprep.subr.mxu0 0.0
        %927 = vmatpush1.msra.mxu0 0.0
        %928 = vmatprep.subr.mxu0 0.0
        %929 = vmatpush1.msra.mxu0 0.0
        %930 = vmatprep.subr.mxu0 0.0
        %931 = vmatpush1.msra.mxu0 0.0
        %932 = vmatprep.subr.mxu0 0.0
        %933 = vmatpush1.msra.mxu0 0.0
        %934 = vmatprep.mubr.f32.mxu0 0.0
        %935 = vmatmul.mubr.f32.gmra.mrb[0].mxu0 %v750
        %v936 = vpop.f32.mrb[0].mxu0
        %v937 = vadd.f32 0.0, %v936
        %v938 = vpop.f32.mrb[0].mxu0
        %939 = vdwg.mxu0
        %vm940 = vcmask 261120
        %v942 = vsel %vm940, %v866, 0
        %v945 = vsel %vm940, %v868, 0
        %947 = vmatprep.subr.mxu0 0.0
        %948 = vmatpush1.xpose.msra.mxu0 %v945
        %949 = vmatprep.subr.mxu0 0.0
        %950 = vmatpush1.xpose.msra.mxu0 0.0
        %951 = vmatprep.subr.mxu0 0.0
        %952 = vmatpush1.xpose.msra.mxu0 0.0
        %953 = vmatprep.subr.mxu0 0.0
        %954 = vmatpush1.xpose.msra.mxu0 0.0
        %955 = vmatprep.subr.mxu0 0.0
        %956 = vmatpush1.xpose.msra.mxu0 0.0
        %957 = vmatprep.subr.mxu0 0.0
        %958 = vmatpush1.xpose.msra.mxu0 0.0
        %959 = vmatprep.subr.mxu0 0.0
        %960 = vmatpush1.xpose.msra.mxu0 0.0
        %961 = vmatprep.subr.mxu0 0.0
        %962 = vmatpush1.xpose.msra.mxu0 0.0
        %963 = vmatprep.subr.mxu0 0.0
        %964 = vmatpush1.xpose.msra.mxu0 0.0
        %965 = vmatprep.subr.mxu0 0.0
        %966 = vmatpush1.xpose.msra.mxu0 0.0
        %967 = vmatprep.subr.mxu0 0.0
        %968 = vmatpush1.xpose.msra.mxu0 0.0
        %969 = vmatprep.subr.mxu0 0.0
        %970 = vmatpush1.xpose.msra.mxu0 0.0
        %971 = vmatprep.subr.mxu0 0.0
        %972 = vmatpush1.xpose.msra.mxu0 0.0
        %973 = vmatprep.subr.mxu0 0.0
        %974 = vmatpush1.xpose.msra.mxu0 0.0
        %975 = vmatprep.subr.mxu0 0.0
        %976 = vmatpush1.xpose.msra.mxu0 0.0
        %977 = vmatprep.subr.mxu0 0.0
        %978 = vmatpush1.xpose.msra.mxu0 0.0
        %979 = vmatprep.subr.mxu0 0.0
        %980 = vmatpush1.xpose.msra.mxu0 0.0
        %981 = vmatprep.subr.mxu0 0.0
        %982 = vmatpush1.xpose.msra.mxu0 0.0
        %983 = vmatprep.subr.mxu0 0.0
        %984 = vmatpush1.xpose.msra.mxu0 0.0
        %985 = vmatprep.subr.mxu0 0.0
        %986 = vmatpush1.xpose.msra.mxu0 0.0
        %987 = vmatprep.subr.mxu0 0.0
        %988 = vmatpush1.xpose.msra.mxu0 0.0
        %989 = vmatprep.subr.mxu0 0.0
        %990 = vmatpush1.xpose.msra.mxu0 0.0
        %991 = vmatprep.subr.mxu0 0.0
        %992 = vmatpush1.xpose.msra.mxu0 0.0
        %993 = vmatprep.subr.mxu0 0.0
        %994 = vmatpush1.xpose.msra.mxu0 0.0
        %995 = vmatprep.subr.mxu0 0.0
        %996 = vmatpush1.xpose.msra.mxu0 0.0
        %997 = vmatprep.subr.mxu0 0.0
        %998 = vmatpush1.xpose.msra.mxu0 0.0
        %999 = vmatprep.subr.mxu0 0.0
        %1000 = vmatpush1.xpose.msra.mxu0 0.0
        %1001 = vmatprep.subr.mxu0 0.0
        %1002 = vmatpush1.xpose.msra.mxu0 0.0
        %1003 = vmatprep.subr.mxu0 0.0
        %1004 = vmatpush1.xpose.msra.mxu0 0.0
        %1005 = vmatprep.subr.mxu0 0.0
        %1006 = vmatpush1.xpose.msra.mxu0 0.0
        %1007 = vmatprep.subr.mxu0 0.0
        %1008 = vmatpush1.xpose.msra.mxu0 0.0
        %1009 = vmatprep.subr.mxu0 0.0
        %1010 = vmatpush1.xpose.msra.mxu0 0.0
        %1011 = vmatprep.mubr.f32.mxu0 0.0
        %1012 = vmatmul.mubr.f32.gmra.mrb[0].mxu0 %v942
        %v1013 = vpop.f32.mrb[0].mxu0
        %v1014 = vadd.f32 0.0, %v1013
        %v1015 = vpop.f32.mrb[0].mxu0
        %1016 = vdwg.mxu0
        %vm1017 = vcmask 64512
        %v1018 = vsel %vm1017, %v1014, -inf
        %1019 = vmax.xlane.f32.xlu0 %v1018
        %v1020 = vpop.xlane.xlu0 %1019
        %v1021 = vsub.f32 %v1014, %v1020
        %v1022 = vmul.f32 %v1021, 1.442695
        %v1023 = vpow.pop %v1022
        %v1024 = vsel %vm1017, %v1023, 0.0
        %1025 = vadd.xlane.f32.xlu0 %v1024
        %v1026 = vpop.xlane.xlu0 %1025
        %v1027 = vrcp.pop %v1026
        %v1028 = vmul.f32 %v1023, %v1027
        %v1030 = vsel %vm1017, %v1028, 0
        %1032 = vmatprep.subr.mxu0 0.0
        %1033 = vmatpush1.msra.mxu0 %v937
        %1034 = vmatprep.subr.mxu0 0.0
        %1035 = vmatpush1.msra.mxu0 0.0
        %1036 = vmatprep.subr.mxu0 0.0
        %1037 = vmatpush1.msra.mxu0 0.0
        %1038 = vmatprep.subr.mxu0 0.0
        %1039 = vmatpush1.msra.mxu0 0.0
        %1040 = vmatprep.subr.mxu0 0.0
        %1041 = vmatpush1.msra.mxu0 0.0
        %1042 = vmatprep.subr.mxu0 0.0
        %1043 = vmatpush1.msra.mxu0 0.0
        %1044 = vmatprep.subr.mxu0 0.0
        %1045 = vmatpush1.msra.mxu0 0.0
        %1046 = vmatprep.subr.mxu0 0.0
        %1047 = vmatpush1.msra.mxu0 0.0
        %1048 = vmatprep.subr.mxu0 0.0
        %1049 = vmatpush1.msra.mxu0 0.0
        %1050 = vmatprep.subr.mxu0 0.0
        %1051 = vmatpush1.msra.mxu0 0.0
        %1052 = vmatprep.subr.mxu0 0.0
        %1053 = vmatpush1.msra.mxu0 0.0
        %1054 = vmatprep.subr.mxu0 0.0
        %1055 = vmatpush1.msra.mxu0 0.0
        %1056 = vmatprep.subr.mxu0 0.0
        %1057 = vmatpush1.msra.mxu0 0.0
        %1058 = vmatprep.subr.mxu0 0.0
        %1059 = vmatpush1.msra.mxu0 0.0
        %1060 = vmatprep.subr.mxu0 0.0
        %1061 = vmatpush1.msra.mxu0 0.0
        %1062 = vmatprep.subr.mxu0 0.0
        %1063 = vmatpush1.msra.mxu0 0.0
        %1064 = vmatprep.subr.mxu0 0.0
        %1065 = vmatpush1.msra.mxu0 0.0
        %1066 = vmatprep.subr.mxu0 0.0
        %1067 = vmatpush1.msra.mxu0 0.0
        %1068 = vmatprep.subr.mxu0 0.0
        %1069 = vmatpush1.msra.mxu0 0.0
        %1070 = vmatprep.subr.mxu0 0.0
        %1071 = vmatpush1.msra.mxu0 0.0
        %1072 = vmatprep.subr.mxu0 0.0
        %1073 = vmatpush1.msra.mxu0 0.0
        %1074 = vmatprep.subr.mxu0 0.0
        %1075 = vmatpush1.msra.mxu0 0.0
        %1076 = vmatprep.subr.mxu0 0.0
        %1077 = vmatpush1.msra.mxu0 0.0
        %1078 = vmatprep.subr.mxu0 0.0
        %1079 = vmatpush1.msra.mxu0 0.0
        %1080 = vmatprep.subr.mxu0 0.0
        %1081 = vmatpush1.msra.mxu0 0.0
        %1082 = vmatprep.subr.mxu0 0.0
        %1083 = vmatpush1.msra.mxu0 0.0
        %1084 = vmatprep.subr.mxu0 0.0
        %1085 = vmatpush1.msra.mxu0 0.0
        %1086 = vmatprep.subr.mxu0 0.0
        %1087 = vmatpush1.msra.mxu0 0.0
        %1088 = vmatprep.subr.mxu0 0.0
        %1089 = vmatpush1.msra.mxu0 0.0
        %1090 = vmatprep.subr.mxu0 0.0
        %1091 = vmatpush1.msra.mxu0 0.0
        %1092 = vmatprep.subr.mxu0 0.0
        %1093 = vmatpush1.msra.mxu0 0.0
        %1094 = vmatprep.subr.mxu0 0.0
        %1095 = vmatpush1.msra.mxu0 0.0
        %1096 = vmatprep.mubr.f32.mxu0 0.0
        %1097 = vmatmul.mubr.f32.gmra.mrb[0].mxu0 %v1030
        %v1098 = vpop.f32.mrb[0].mxu0
        %v1099 = vadd.f32 0.0, %v1098
        %v1100 = vpop.f32.mrb[0].mxu0
        %1101 = vdwg.mxu0
        %1102 = vrot.lane.b32.xlu0 %v866, 96
        %v1103 = vpop.permute.xlu0 %1102
        %1104 = vrot.lane.b32.xlu0 %v868, 96
        %v1105 = vpop.permute.xlu0 %1104
        %v1106 = vsel %vm940, %v1103, 0
        %v1108 = vsel %vm940, %v1105, 0
        %1110 = vmatprep.subr.mxu0 0.0
        %1111 = vmatpush1.xpose.msra.mxu0 %v1108
        %1112 = vmatprep.subr.mxu0 0.0
        %1113 = vmatpush1.xpose.msra.mxu0 0.0
        %1114 = vmatprep.subr.mxu0 0.0
        %1115 = vmatpush1.xpose.msra.mxu0 0.0
        %1116 = vmatprep.subr.mxu0 0.0
        %1117 = vmatpush1.xpose.msra.mxu0 0.0
        %1118 = vmatprep.subr.mxu0 0.0
        %1119 = vmatpush1.xpose.msra.mxu0 0.0
        %1120 = vmatprep.subr.mxu0 0.0
        %1121 = vmatpush1.xpose.msra.mxu0 0.0
        %1122 = vmatprep.subr.mxu0 0.0
        %1123 = vmatpush1.xpose.msra.mxu0 0.0
        %1124 = vmatprep.subr.mxu0 0.0
        %1125 = vmatpush1.xpose.msra.mxu0 0.0
        %1126 = vmatprep.subr.mxu0 0.0
        %1127 = vmatpush1.xpose.msra.mxu0 0.0
        %1128 = vmatprep.subr.mxu0 0.0
        %1129 = vmatpush1.xpose.msra.mxu0 0.0
        %1130 = vmatprep.subr.mxu0 0.0
        %1131 = vmatpush1.xpose.msra.mxu0 0.0
        %1132 = vmatprep.subr.mxu0 0.0
        %1133 = vmatpush1.xpose.msra.mxu0 0.0
        %1134 = vmatprep.subr.mxu0 0.0
        %1135 = vmatpush1.xpose.msra.mxu0 0.0
        %1136 = vmatprep.subr.mxu0 0.0
        %1137 = vmatpush1.xpose.msra.mxu0 0.0
        %1138 = vmatprep.subr.mxu0 0.0
        %1139 = vmatpush1.xpose.msra.mxu0 0.0
        %1140 = vmatprep.subr.mxu0 0.0
        %1141 = vmatpush1.xpose.msra.mxu0 0.0
        %1142 = vmatprep.subr.mxu0 0.0
        %1143 = vmatpush1.xpose.msra.mxu0 0.0
        %1144 = vmatprep.subr.mxu0 0.0
        %1145 = vmatpush1.xpose.msra.mxu0 0.0
        %1146 = vmatprep.subr.mxu0 0.0
        %1147 = vmatpush1.xpose.msra.mxu0 0.0
        %1148 = vmatprep.subr.mxu0 0.0
        %1149 = vmatpush1.xpose.msra.mxu0 0.0
        %1150 = vmatprep.subr.mxu0 0.0
        %1151 = vmatpush1.xpose.msra.mxu0 0.0
        %1152 = vmatprep.subr.mxu0 0.0
        %1153 = vmatpush1.xpose.msra.mxu0 0.0
        %1154 = vmatprep.subr.mxu0 0.0
        %1155 = vmatpush1.xpose.msra.mxu0 0.0
        %1156 = vmatprep.subr.mxu0 0.0
        %1157 = vmatpush1.xpose.msra.mxu0 0.0
        %1158 = vmatprep.subr.mxu0 0.0
        %1159 = vmatpush1.xpose.msra.mxu0 0.0
        %1160 = vmatprep.subr.mxu0 0.0
        %1161 = vmatpush1.xpose.msra.mxu0 0.0
        %1162 = vmatprep.subr.mxu0 0.0
        %1163 = vmatpush1.xpose.msra.mxu0 0.0
        %1164 = vmatprep.subr.mxu0 0.0
        %1165 = vmatpush1.xpose.msra.mxu0 0.0
        %1166 = vmatprep.subr.mxu0 0.0
        %1167 = vmatpush1.xpose.msra.mxu0 0.0
        %1168 = vmatprep.subr.mxu0 0.0
        %1169 = vmatpush1.xpose.msra.mxu0 0.0
        %1170 = vmatprep.subr.mxu0 0.0
        %1171 = vmatpush1.xpose.msra.mxu0 0.0
        %1172 = vmatprep.subr.mxu0 0.0
        %1173 = vmatpush1.xpose.msra.mxu0 0.0
        %1174 = vmatprep.mubr.f32.mxu0 0.0
        %1175 = vmatmul.mubr.f32.gmra.mrb[0].mxu0 %v1106
        %v1176 = vpop.f32.mrb[0].mxu0
        %v1177 = vadd.f32 0.0, %v1176
        %v1178 = vpop.f32.mrb[0].mxu0
        %1179 = vdwg.mxu0
        %v1180 = vsel %vm1017, %v1177, -inf
        %1181 = vmax.xlane.f32.xlu0 %v1180
        %v1182 = vpop.xlane.xlu0 %1181
        %v1183 = vsub.f32 %v1177, %v1182
        %v1184 = vmul.f32 %v1183, 1.442695
        %v1185 = vpow.pop %v1184
        %v1186 = vsel %vm1017, %v1185, 0.0
        %1187 = vadd.xlane.f32.xlu0 %v1186
        %v1188 = vpop.xlane.xlu0 %1187
        %v1189 = vrcp.pop %v1188
        %v1190 = vmul.f32 %v1185, %v1189
        %1192 = vrot.lane.b32.xlu0 %v937, 96
        %v1193 = vpop.permute.xlu0 %1192
        %v1196 = vsel %vm1017, %v1190, 0
        %1198 = vmatprep.subr.mxu0 0.0
        %1199 = vmatpush1.msra.mxu0 %v1193
        %1200 = vmatprep.subr.mxu0 0.0
        %1201 = vmatpush1.msra.mxu0 0.0
        %1202 = vmatprep.subr.mxu0 0.0
        %1203 = vmatpush1.msra.mxu0 0.0
        %1204 = vmatprep.subr.mxu0 0.0
        %1205 = vmatpush1.msra.mxu0 0.0
        %1206 = vmatprep.subr.mxu0 0.0
        %1207 = vmatpush1.msra.mxu0 0.0
        %1208 = vmatprep.subr.mxu0 0.0
        %1209 = vmatpush1.msra.mxu0 0.0
        %1210 = vmatprep.subr.mxu0 0.0
        %1211 = vmatpush1.msra.mxu0 0.0
        %1212 = vmatprep.subr.mxu0 0.0
        %1213 = vmatpush1.msra.mxu0 0.0
        %1214 = vmatprep.subr.mxu0 0.0
        %1215 = vmatpush1.msra.mxu0 0.0
        %1216 = vmatprep.subr.mxu0 0.0
        %1217 = vmatpush1.msra.mxu0 0.0
        %1218 = vmatprep.subr.mxu0 0.0
        %1219 = vmatpush1.msra.mxu0 0.0
        %1220 = vmatprep.subr.mxu0 0.0
        %1221 = vmatpush1.msra.mxu0 0.0
        %1222 = vmatprep.subr.mxu0 0.0
        %1223 = vmatpush1.msra.mxu0 0.0
        %1224 = vmatprep.subr.mxu0 0.0
        %1225 = vmatpush1.msra.mxu0 0.0
        %1226 = vmatprep.subr.mxu0 0.0
        %1227 = vmatpush1.msra.mxu0 0.0
        %1228 = vmatprep.subr.mxu0 0.0
        %1229 = vmatpush1.msra.mxu0 0.0
        %1230 = vmatprep.subr.mxu0 0.0
        %1231 = vmatpush1.msra.mxu0 0.0
        %1232 = vmatprep.subr.mxu0 0.0
        %1233 = vmatpush1.msra.mxu0 0.0
        %1234 = vmatprep.subr.mxu0 0.0
        %1235 = vmatpush1.msra.mxu0 0.0
        %1236 = vmatprep.subr.mxu0 0.0
        %1237 = vmatpush1.msra.mxu0 0.0
        %1238 = vmatprep.subr.mxu0 0.0
        %1239 = vmatpush1.msra.mxu0 0.0
        %1240 = vmatprep.subr.mxu0 0.0
        %1241 = vmatpush1.msra.mxu0 0.0
        %1242 = vmatprep.subr.mxu0 0.0
        %1243 = vmatpush1.msra.mxu0 0.0
        %1244 = vmatprep.subr.mxu0 0.0
        %1245 = vmatpush1.msra.mxu0 0.0
        %1246 = vmatprep.subr.mxu0 0.0
        %1247 = vmatpush1.msra.mxu0 0.0
        %1248 = vmatprep.subr.mxu0 0.0
        %1249 = vmatpush1.msra.mxu0 0.0
        %1250 = vmatprep.subr.mxu0 0.0
        %1251 = vmatpush1.msra.mxu0 0.0
        %1252 = vmatprep.subr.mxu0 0.0
        %1253 = vmatpush1.msra.mxu0 0.0
        %1254 = vmatprep.subr.mxu0 0.0
        %1255 = vmatpush1.msra.mxu0 0.0
        %1256 = vmatprep.subr.mxu0 0.0
        %1257 = vmatpush1.msra.mxu0 0.0
        %1258 = vmatprep.subr.mxu0 0.0
        %1259 = vmatpush1.msra.mxu0 0.0
        %1260 = vmatprep.subr.mxu0 0.0
        %1261 = vmatpush1.msra.mxu0 0.0
        %1262 = vmatprep.mubr.f32.mxu0 0.0
        %1263 = vmatmul.mubr.f32.gmra.mrb[0].mxu0 %v1196
        %v1264 = vpop.f32.mrb[0].mxu0
        %v1265 = vadd.f32 0.0, %v1264
        %v1266 = vpop.f32.mrb[0].mxu0
        %1267 = vdwg.mxu0
        %1268 = vrot.lane.b32.xlu0 %v866, 64
        %v1269 = vpop.permute.xlu0 %1268
        %1270 = vrot.lane.b32.xlu0 %v868, 64
        %v1271 = vpop.permute.xlu0 %1270
        %v1272 = vsel %vm940, %v1269, 0
        %v1274 = vsel %vm940, %v1271, 0
        %1276 = vmatprep.subr.mxu0 0.0
        %1277 = vmatpush1.xpose.msra.mxu0 %v1274
        %1278 = vmatprep.subr.mxu0 0.0
        %1279 = vmatpush1.xpose.msra.mxu0 0.0
        %1280 = vmatprep.subr.mxu0 0.0
        %1281 = vmatpush1.xpose.msra.mxu0 0.0
        %1282 = vmatprep.subr.mxu0 0.0
        %1283 = vmatpush1.xpose.msra.mxu0 0.0
        %1284 = vmatprep.subr.mxu0 0.0
        %1285 = vmatpush1.xpose.msra.mxu0 0.0
        %1286 = vmatprep.subr.mxu0 0.0
        %1287 = vmatpush1.xpose.msra.mxu0 0.0
        %1288 = vmatprep.subr.mxu0 0.0
        %1289 = vmatpush1.xpose.msra.mxu0 0.0
        %1290 = vmatprep.subr.mxu0 0.0
        %1291 = vmatpush1.xpose.msra.mxu0 0.0
        %1292 = vmatprep.subr.mxu0 0.0
        %1293 = vmatpush1.xpose.msra.mxu0 0.0
        %1294 = vmatprep.subr.mxu0 0.0
        %1295 = vmatpush1.xpose.msra.mxu0 0.0
        %1296 = vmatprep.subr.mxu0 0.0
        %1297 = vmatpush1.xpose.msra.mxu0 0.0
        %1298 = vmatprep.subr.mxu0 0.0
        %1299 = vmatpush1.xpose.msra.mxu0 0.0
        %1300 = vmatprep.subr.mxu0 0.0
        %1301 = vmatpush1.xpose.msra.mxu0 0.0
        %1302 = vmatprep.subr.mxu0 0.0
        %1303 = vmatpush1.xpose.msra.mxu0 0.0
        %1304 = vmatprep.subr.mxu0 0.0
        %1305 = vmatpush1.xpose.msra.mxu0 0.0
        %1306 = vmatprep.subr.mxu0 0.0
        %1307 = vmatpush1.xpose.msra.mxu0 0.0
        %1308 = vmatprep.subr.mxu0 0.0
        %1309 = vmatpush1.xpose.msra.mxu0 0.0
        %1310 = vmatprep.subr.mxu0 0.0
        %1311 = vmatpush1.xpose.msra.mxu0 0.0
        %1312 = vmatprep.subr.mxu0 0.0
        %1313 = vmatpush1.xpose.msra.mxu0 0.0
        %1314 = vmatprep.subr.mxu0 0.0
        %1315 = vmatpush1.xpose.msra.mxu0 0.0
        %1316 = vmatprep.subr.mxu0 0.0
        %1317 = vmatpush1.xpose.msra.mxu0 0.0
        %1318 = vmatprep.subr.mxu0 0.0
        %1319 = vmatpush1.xpose.msra.mxu0 0.0
        %1320 = vmatprep.subr.mxu0 0.0
        %1321 = vmatpush1.xpose.msra.mxu0 0.0
        %1322 = vmatprep.subr.mxu0 0.0
        %1323 = vmatpush1.xpose.msra.mxu0 0.0
        %1324 = vmatprep.subr.mxu0 0.0
        %1325 = vmatpush1.xpose.msra.mxu0 0.0
        %1326 = vmatprep.subr.mxu0 0.0
        %1327 = vmatpush1.xpose.msra.mxu0 0.0
        %1328 = vmatprep.subr.mxu0 0.0
        %1329 = vmatpush1.xpose.msra.mxu0 0.0
        %1330 = vmatprep.subr.mxu0 0.0
        %1331 = vmatpush1.xpose.msra.mxu0 0.0
        %1332 = vmatprep.subr.mxu0 0.0
        %1333 = vmatpush1.xpose.msra.mxu0 0.0
        %1334 = vmatprep.subr.mxu0 0.0
        %1335 = vmatpush1.xpose.msra.mxu0 0.0
        %1336 = vmatprep.subr.mxu0 0.0
        %1337 = vmatpush1.xpose.msra.mxu0 0.0
        %1338 = vmatprep.subr.mxu0 0.0
        %1339 = vmatpush1.xpose.msra.mxu0 0.0
        %1340 = vmatprep.mubr.f32.mxu0 0.0
        %1341 = vmatmul.mubr.f32.gmra.mrb[0].mxu0 %v1272
        %v1342 = vpop.f32.mrb[0].mxu0
        %v1343 = vadd.f32 0.0, %v1342
        %v1344 = vpop.f32.mrb[0].mxu0
        %1345 = vdwg.mxu0
        %v1346 = vsel %vm1017, %v1343, -inf
        %1347 = vmax.xlane.f32.xlu0 %v1346
        %v1348 = vpop.xlane.xlu0 %1347
        %v1349 = vsub.f32 %v1343, %v1348
        %v1350 = vmul.f32 %v1349, 1.442695
        %v1351 = vpow.pop %v1350
        %v1352 = vsel %vm1017, %v1351, 0.0
        %1353 = vadd.xlane.f32.xlu0 %v1352
        %v1354 = vpop.xlane.xlu0 %1353
        %v1355 = vrcp.pop %v1354
        %v1356 = vmul.f32 %v1351, %v1355
        %1357 = vrot.lane.b32.xlu0 %v937, 64
        %v1358 = vpop.permute.xlu0 %1357
        %v1361 = vsel %vm1017, %v1356, 0
        %1363 = vmatprep.subr.mxu0 0.0
        %1364 = vmatpush1.msra.mxu0 %v1358
        %1365 = vmatprep.subr.mxu0 0.0
        %1366 = vmatpush1.msra.mxu0 0.0
        %1367 = vmatprep.subr.mxu0 0.0
        %1368 = vmatpush1.msra.mxu0 0.0
        %1369 = vmatprep.subr.mxu0 0.0
        %1370 = vmatpush1.msra.mxu0 0.0
        %1371 = vmatprep.subr.mxu0 0.0
        %1372 = vmatpush1.msra.mxu0 0.0
        %1373 = vmatprep.subr.mxu0 0.0
        %1374 = vmatpush1.msra.mxu0 0.0
        %1375 = vmatprep.subr.mxu0 0.0
        %1376 = vmatpush1.msra.mxu0 0.0
        %1377 = vmatprep.subr.mxu0 0.0
        %1378 = vmatpush1.msra.mxu0 0.0
        %1379 = vmatprep.subr.mxu0 0.0
        %1380 = vmatpush1.msra.mxu0 0.0
        %1381 = vmatprep.subr.mxu0 0.0
        %1382 = vmatpush1.msra.mxu0 0.0
        %1383 = vmatprep.subr.mxu0 0.0
        %1384 = vmatpush1.msra.mxu0 0.0
        %1385 = vmatprep.subr.mxu0 0.0
        %1386 = vmatpush1.msra.mxu0 0.0
        %1387 = vmatprep.subr.mxu0 0.0
        %1388 = vmatpush1.msra.mxu0 0.0
        %1389 = vmatprep.subr.mxu0 0.0
        %1390 = vmatpush1.msra.mxu0 0.0
        %1391 = vmatprep.subr.mxu0 0.0
        %1392 = vmatpush1.msra.mxu0 0.0
        %1393 = vmatprep.subr.mxu0 0.0
        %1394 = vmatpush1.msra.mxu0 0.0
        %1395 = vmatprep.subr.mxu0 0.0
        %1396 = vmatpush1.msra.mxu0 0.0
        %1397 = vmatprep.subr.mxu0 0.0
        %1398 = vmatpush1.msra.mxu0 0.0
        %1399 = vmatprep.subr.mxu0 0.0
        %1400 = vmatpush1.msra.mxu0 0.0
        %1401 = vmatprep.subr.mxu0 0.0
        %1402 = vmatpush1.msra.mxu0 0.0
        %1403 = vmatprep.subr.mxu0 0.0
        %1404 = vmatpush1.msra.mxu0 0.0
        %1405 = vmatprep.subr.mxu0 0.0
        %1406 = vmatpush1.msra.mxu0 0.0
        %1407 = vmatprep.subr.mxu0 0.0
        %1408 = vmatpush1.msra.mxu0 0.0
        %1409 = vmatprep.subr.mxu0 0.0
        %1410 = vmatpush1.msra.mxu0 0.0
        %1411 = vmatprep.subr.mxu0 0.0
        %1412 = vmatpush1.msra.mxu0 0.0
        %1413 = vmatprep.subr.mxu0 0.0
        %1414 = vmatpush1.msra.mxu0 0.0
        %1415 = vmatprep.subr.mxu0 0.0
        %1416 = vmatpush1.msra.mxu0 0.0
        %1417 = vmatprep.subr.mxu0 0.0
        %1418 = vmatpush1.msra.mxu0 0.0
        %1419 = vmatprep.subr.mxu0 0.0
        %1420 = vmatpush1.msra.mxu0 0.0
        %1421 = vmatprep.subr.mxu0 0.0
        %1422 = vmatpush1.msra.mxu0 0.0
        %1423 = vmatprep.subr.mxu0 0.0
        %1424 = vmatpush1.msra.mxu0 0.0
        %1425 = vmatprep.subr.mxu0 0.0
        %1426 = vmatpush1.msra.mxu0 0.0
        %1427 = vmatprep.mubr.f32.mxu0 0.0
        %1428 = vmatmul.mubr.f32.gmra.mrb[0].mxu0 %v1361
        %v1429 = vpop.f32.mrb[0].mxu0
        %v1430 = vadd.f32 0.0, %v1429
        %v1431 = vpop.f32.mrb[0].mxu0
        %1432 = vdwg.mxu0
        %1433 = vrot.lane.b32.xlu0 %v866, 32
        %v1434 = vpop.permute.xlu0 %1433
        %1435 = vrot.lane.b32.xlu0 %v868, 32
        %v1436 = vpop.permute.xlu0 %1435
        %v1437 = vsel %vm940, %v1434, 0
        %v1439 = vsel %vm940, %v1436, 0
        %1441 = vmatprep.subr.mxu0 0.0
        %1442 = vmatpush1.xpose.msra.mxu0 %v1439
        %1443 = vmatprep.subr.mxu0 0.0
        %1444 = vmatpush1.xpose.msra.mxu0 0.0
        %1445 = vmatprep.subr.mxu0 0.0
        %1446 = vmatpush1.xpose.msra.mxu0 0.0
        %1447 = vmatprep.subr.mxu0 0.0
        %1448 = vmatpush1.xpose.msra.mxu0 0.0
        %1449 = vmatprep.subr.mxu0 0.0
        %1450 = vmatpush1.xpose.msra.mxu0 0.0
        %1451 = vmatprep.subr.mxu0 0.0
        %1452 = vmatpush1.xpose.msra.mxu0 0.0
        %1453 = vmatprep.subr.mxu0 0.0
        %1454 = vmatpush1.xpose.msra.mxu0 0.0
        %1455 = vmatprep.subr.mxu0 0.0
        %1456 = vmatpush1.xpose.msra.mxu0 0.0
        %1457 = vmatprep.subr.mxu0 0.0
        %1458 = vmatpush1.xpose.msra.mxu0 0.0
        %1459 = vmatprep.subr.mxu0 0.0
        %1460 = vmatpush1.xpose.msra.mxu0 0.0
        %1461 = vmatprep.subr.mxu0 0.0
        %1462 = vmatpush1.xpose.msra.mxu0 0.0
        %1463 = vmatprep.subr.mxu0 0.0
        %1464 = vmatpush1.xpose.msra.mxu0 0.0
        %1465 = vmatprep.subr.mxu0 0.0
        %1466 = vmatpush1.xpose.msra.mxu0 0.0
        %1467 = vmatprep.subr.mxu0 0.0
        %1468 = vmatpush1.xpose.msra.mxu0 0.0
        %1469 = vmatprep.subr.mxu0 0.0
        %1470 = vmatpush1.xpose.msra.mxu0 0.0
        %1471 = vmatprep.subr.mxu0 0.0
        %1472 = vmatpush1.xpose.msra.mxu0 0.0
        %1473 = vmatprep.subr.mxu0 0.0
        %1474 = vmatpush1.xpose.msra.mxu0 0.0
        %1475 = vmatprep.subr.mxu0 0.0
        %1476 = vmatpush1.xpose.msra.mxu0 0.0
        %1477 = vmatprep.subr.mxu0 0.0
        %1478 = vmatpush1.xpose.msra.mxu0 0.0
        %1479 = vmatprep.subr.mxu0 0.0
        %1480 = vmatpush1.xpose.msra.mxu0 0.0
        %1481 = vmatprep.subr.mxu0 0.0
        %1482 = vmatpush1.xpose.msra.mxu0 0.0
        %1483 = vmatprep.subr.mxu0 0.0
        %1484 = vmatpush1.xpose.msra.mxu0 0.0
        %1485 = vmatprep.subr.mxu0 0.0
        %1486 = vmatpush1.xpose.msra.mxu0 0.0
        %1487 = vmatprep.subr.mxu0 0.0
        %1488 = vmatpush1.xpose.msra.mxu0 0.0
        %1489 = vmatprep.subr.mxu0 0.0
        %1490 = vmatpush1.xpose.msra.mxu0 0.0
        %1491 = vmatprep.subr.mxu0 0.0
        %1492 = vmatpush1.xpose.msra.mxu0 0.0
        %1493 = vmatprep.subr.mxu0 0.0
        %1494 = vmatpush1.xpose.msra.mxu0 0.0
        %1495 = vmatprep.subr.mxu0 0.0
        %1496 = vmatpush1.xpose.msra.mxu0 0.0
        %1497 = vmatprep.subr.mxu0 0.0
        %1498 = vmatpush1.xpose.msra.mxu0 0.0
        %1499 = vmatprep.subr.mxu0 0.0
        %1500 = vmatpush1.xpose.msra.mxu0 0.0
        %1501 = vmatprep.subr.mxu0 0.0
        %1502 = vmatpush1.xpose.msra.mxu0 0.0
        %1503 = vmatprep.subr.mxu0 0.0
        %1504 = vmatpush1.xpose.msra.mxu0 0.0
        %1505 = vmatprep.mubr.f32.mxu0 0.0
        %1506 = vmatmul.mubr.f32.gmra.mrb[0].mxu0 %v1437
        %v1507 = vpop.f32.mrb[0].mxu0
        %v1508 = vadd.f32 0.0, %v1507
        %v1509 = vpop.f32.mrb[0].mxu0
        %1510 = vdwg.mxu0
        %v1511 = vsel %vm1017, %v1508, -inf
        %1512 = vmax.xlane.f32.xlu0 %v1511
        %v1513 = vpop.xlane.xlu0 %1512
        %v1514 = vsub.f32 %v1508, %v1513
        %v1515 = vmul.f32 %v1514, 1.442695
        %v1516 = vpow.pop %v1515
        %v1517 = vsel %vm1017, %v1516, 0.0
        %1518 = vadd.xlane.f32.xlu0 %v1517
        %v1519 = vpop.xlane.xlu0 %1518
        %v1520 = vrcp.pop %v1519
        %v1521 = vmul.f32 %v1516, %v1520
        %1522 = vrot.lane.b32.xlu0 %v937, 32
        %v1523 = vpop.permute.xlu0 %1522
        %v1526 = vsel %vm1017, %v1521, 0
        %1528 = vmatprep.subr.mxu0 0.0
        %1529 = vmatpush1.msra.mxu0 %v1523
        %1530 = vmatprep.subr.mxu0 0.0
        %1531 = vmatpush1.msra.mxu0 0.0
        %1532 = vmatprep.subr.mxu0 0.0
        %1533 = vmatpush1.msra.mxu0 0.0
        %1534 = vmatprep.subr.mxu0 0.0
        %1535 = vmatpush1.msra.mxu0 0.0
        %1536 = vmatprep.subr.mxu0 0.0
        %1537 = vmatpush1.msra.mxu0 0.0
        %1538 = vmatprep.subr.mxu0 0.0
        %1539 = vmatpush1.msra.mxu0 0.0
        %1540 = vmatprep.subr.mxu0 0.0
        %1541 = vmatpush1.msra.mxu0 0.0
        %1542 = vmatprep.subr.mxu0 0.0
        %1543 = vmatpush1.msra.mxu0 0.0
        %1544 = vmatprep.subr.mxu0 0.0
        %1545 = vmatpush1.msra.mxu0 0.0
        %1546 = vmatprep.subr.mxu0 0.0
        %1547 = vmatpush1.msra.mxu0 0.0
        %1548 = vmatprep.subr.mxu0 0.0
        %1549 = vmatpush1.msra.mxu0 0.0
        %1550 = vmatprep.subr.mxu0 0.0
        %1551 = vmatpush1.msra.mxu0 0.0
        %1552 = vmatprep.subr.mxu0 0.0
        %1553 = vmatpush1.msra.mxu0 0.0
        %1554 = vmatprep.subr.mxu0 0.0
        %1555 = vmatpush1.msra.mxu0 0.0
        %1556 = vmatprep.subr.mxu0 0.0
        %1557 = vmatpush1.msra.mxu0 0.0
        %1558 = vmatprep.subr.mxu0 0.0
        %1559 = vmatpush1.msra.mxu0 0.0
        %1560 = vmatprep.subr.mxu0 0.0
        %1561 = vmatpush1.msra.mxu0 0.0
        %1562 = vmatprep.subr.mxu0 0.0
        %1563 = vmatpush1.msra.mxu0 0.0
        %1564 = vmatprep.subr.mxu0 0.0
        %1565 = vmatpush1.msra.mxu0 0.0
        %1566 = vmatprep.subr.mxu0 0.0
        %1567 = vmatpush1.msra.mxu0 0.0
        %1568 = vmatprep.subr.mxu0 0.0
        %1569 = vmatpush1.msra.mxu0 0.0
        %1570 = vmatprep.subr.mxu0 0.0
        %1571 = vmatpush1.msra.mxu0 0.0
        %1572 = vmatprep.subr.mxu0 0.0
        %1573 = vmatpush1.msra.mxu0 0.0
        %1574 = vmatprep.subr.mxu0 0.0
        %1575 = vmatpush1.msra.mxu0 0.0
        %1576 = vmatprep.subr.mxu0 0.0
        %1577 = vmatpush1.msra.mxu0 0.0
        %1578 = vmatprep.subr.mxu0 0.0
        %1579 = vmatpush1.msra.mxu0 0.0
        %1580 = vmatprep.subr.mxu0 0.0
        %1581 = vmatpush1.msra.mxu0 0.0
        %1582 = vmatprep.subr.mxu0 0.0
        %1583 = vmatpush1.msra.mxu0 0.0
        %1584 = vmatprep.subr.mxu0 0.0
        %1585 = vmatpush1.msra.mxu0 0.0
        %1586 = vmatprep.subr.mxu0 0.0
        %1587 = vmatpush1.msra.mxu0 0.0
        %1588 = vmatprep.subr.mxu0 0.0
        %1589 = vmatpush1.msra.mxu0 0.0
        %1590 = vmatprep.subr.mxu0 0.0
        %1591 = vmatpush1.msra.mxu0 0.0
        %1592 = vmatprep.mubr.f32.mxu0 0.0
        %1593 = vmatmul.mubr.f32.gmra.mrb[0].mxu0 %v1526
        %v1594 = vpop.f32.mrb[0].mxu0
        %v1595 = vadd.f32 0.0, %v1594
        %v1596 = vpop.f32.mrb[0].mxu0
        %1597 = vdwg.mxu0
        %1599 = vrot.lane.b32.xlu0 %v1265, 32
        %v1600 = vpop.permute.xlu0 %1599
        %1603 = vrot.lane.b32.xlu0 %v1430, 64
        %v1604 = vpop.permute.xlu0 %1603
        %1607 = vrot.lane.b32.xlu0 %v1595, 96
        %v1608 = vpop.permute.xlu0 %1607
        %v1610 = vsel %vm940, %v1099, %v1600
        %vm1611 = vcmask 523264
        %v1612 = vsel %vm1611, %v1610, %v1604
        %vm1613 = vcmask 785408
        %v1614 = vsel %vm1613, %v1612, %v1608
        %v1615 = vld [vmem:[%s595] sm:$0xff]
        %v1616 = vld [vmem:[%s595 + $0x8] sm:$0xff]
        %v1617 = vld [vmem:[%s595 + $0x10] sm:$0xff]
        %v1618 = vld [vmem:[%s595 + $0x18] sm:$0xff]
        %v1619 = vld [vmem:[%s595 + $0x20] sm:$0xff]
        %v1620 = vld [vmem:[%s595 + $0x28] sm:$0xff]
        %v1621 = vld [vmem:[%s595 + $0x30] sm:$0xff]
        %v1622 = vld [vmem:[%s595 + $0x38] sm:$0xff]
        %v1623 = vld [vmem:[%s595 + $0x40] sm:$0xff]
        %v1624 = vld [vmem:[%s595 + $0x48] sm:$0xff]
        %v1625 = vld [vmem:[%s595 + $0x50] sm:$0xff]
        %v1626 = vld [vmem:[%s595 + $0x58] sm:$0xff]
        %v1627 = vld [vmem:[%s595 + $0x60] sm:$0xff]
        %v1628 = vld [vmem:[%s595 + $0x68] sm:$0xff]
        %v1629 = vld [vmem:[%s595 + $0x70] sm:$0xff]
        %v1630 = vld [vmem:[%s595 + $0x78] sm:$0xff]
        %1631 = vmatprep.subr.mxu0 0.0
        %1632 = vmatpush1.msra.mxu0 %v1615
        %1633 = vmatprep.subr.mxu0 0.0
        %1634 = vmatpush1.msra.mxu0 %v1616
        %1635 = vmatprep.subr.mxu0 0.0
        %1636 = vmatpush1.msra.mxu0 %v1617
        %1637 = vmatprep.subr.mxu0 0.0
        %1638 = vmatpush1.msra.mxu0 %v1618
        %1639 = vmatprep.subr.mxu0 0.0
        %1640 = vmatpush1.msra.mxu0 %v1619
        %1641 = vmatprep.subr.mxu0 0.0
        %1642 = vmatpush1.msra.mxu0 %v1620
        %1643 = vmatprep.subr.mxu0 0.0
        %1644 = vmatpush1.msra.mxu0 %v1621
        %1645 = vmatprep.subr.mxu0 0.0
        %1646 = vmatpush1.msra.mxu0 %v1622
        %1647 = vmatprep.subr.mxu0 0.0
        %1648 = vmatpush1.msra.mxu0 %v1623
        %1649 = vmatprep.subr.mxu0 0.0
        %1650 = vmatpush1.msra.mxu0 %v1624
        %1651 = vmatprep.subr.mxu0 0.0
        %1652 = vmatpush1.msra.mxu0 %v1625
        %1653 = vmatprep.subr.mxu0 0.0
        %1654 = vmatpush1.msra.mxu0 %v1626
        %1655 = vmatprep.subr.mxu0 0.0
        %1656 = vmatpush1.msra.mxu0 %v1627
        %1657 = vmatprep.subr.mxu0 0.0
        %1658 = vmatpush1.msra.mxu0 %v1628
        %1659 = vmatprep.subr.mxu0 0.0
        %1660 = vmatpush1.msra.mxu0 %v1629
        %1661 = vmatprep.subr.mxu0 0.0
        %1662 = vmatpush1.msra.mxu0 %v1630
        %1663 = vmatprep.subr.mxu0 0.0
        %1664 = vmatpush1.msra.mxu0 0.0
        %1665 = vmatprep.subr.mxu0 0.0
        %1666 = vmatpush1.msra.mxu0 0.0
        %1667 = vmatprep.subr.mxu0 0.0
        %1668 = vmatpush1.msra.mxu0 0.0
        %1669 = vmatprep.subr.mxu0 0.0
        %1670 = vmatpush1.msra.mxu0 0.0
        %1671 = vmatprep.subr.mxu0 0.0
        %1672 = vmatpush1.msra.mxu0 0.0
        %1673 = vmatprep.subr.mxu0 0.0
        %1674 = vmatpush1.msra.mxu0 0.0
        %1675 = vmatprep.subr.mxu0 0.0
        %1676 = vmatpush1.msra.mxu0 0.0
        %1677 = vmatprep.subr.mxu0 0.0
        %1678 = vmatpush1.msra.mxu0 0.0
        %1679 = vmatprep.subr.mxu0 0.0
        %1680 = vmatpush1.msra.mxu0 0.0
        %1681 = vmatprep.subr.mxu0 0.0
        %1682 = vmatpush1.msra.mxu0 0.0
        %1683 = vmatprep.subr.mxu0 0.0
        %1684 = vmatpush1.msra.mxu0 0.0
        %1685 = vmatprep.subr.mxu0 0.0
        %1686 = vmatpush1.msra.mxu0 0.0
        %1687 = vmatprep.subr.mxu0 0.0
        %1688 = vmatpush1.msra.mxu0 0.0
        %1689 = vmatprep.subr.mxu0 0.0
        %1690 = vmatpush1.msra.mxu0 0.0
        %1691 = vmatprep.subr.mxu0 0.0
        %1692 = vmatpush1.msra.mxu0 0.0
        %1693 = vmatprep.subr.mxu0 0.0
        %1694 = vmatpush1.msra.mxu0 0.0
        %1695 = vmatprep.mubr.f32.mxu0 0.0
        %1696 = vmatmul.mubr.f32.gmra.mrb[0].mxu0 %v1614
        %v1697 = vpop.f32.mrb[0].mxu0
        %v1698 = vadd.f32 0.0, %v1697
        %v1699 = vpop.f32.mrb[0].mxu0
        %1700 = vdwg.mxu0
        %v1701 = vadd.f32 %v722, %v1698
        %v1702 = vld [vmem:[%s702] sm:$0x1]
        %v1704 = vlaneseq
        %v1705 = vshrl.u32 %v1704, 7
        %v1706 = vsub.s32 0, %v1705
        %v1707 = vrot.slane %v1702, %v1706
        %v1709 = vadd.f32 %v1701, %v1707
        %v1710 = vld [vmem:[%s705] sm:$0x1]
        %v1711 = vld [vmem:[%s708] sm:$0x1]
        %1712 = vadd.xlane.f32.xlu0 %v1709
        %v1713 = vpop.xlane.xlu0 %1712
        %v1714 = vmul.f32 %v1713, %v727
        %v1715 = vsub.f32 %v1709, %v1714
        %v1716 = vmul.f32 %v1715, %v1715
        %1717 = vadd.xlane.f32.xlu0 %v1716
        %v1718 = vpop.xlane.xlu0 %1717
        %v1719 = vmul.f32 %v1718, %v727
        %v1720 = vadd.f32 %v1719, 1e-05
        %v1721 = vrsqrt.pop %v1720
        %v1722 = vmul.f32 %v1715, %v1721
        %v1724 = vlaneseq
        %v1725 = vshrl.u32 %v1724, 7
        %v1726 = vsub.s32 0, %v1725
        %v1727 = vrot.slane %v1710, %v1726
        %v1729 = vmul.f32 %v1722, %v1727
        %v1731 = vlaneseq
        %v1732 = vshrl.u32 %v1731, 7
        %v1733 = vsub.s32 0, %v1732
        %v1734 = vrot.slane %v1711, %v1733
        %v1736 = vadd.f32 %v1729, %v1734
        %v1737 = vld [vmem:[%s604] sm:$0xff]
        %v1738 = vld [vmem:[%s604 + $0x8] sm:$0xff]
        %v1739 = vld [vmem:[%s604 + $0x10] sm:$0xff]
        %v1740 = vld [vmem:[%s604 + $0x18] sm:$0xff]
        %v1741 = vld [vmem:[%s604 + $0x20] sm:$0xff]
        %v1742 = vld [vmem:[%s604 + $0x28] sm:$0xff]
        %v1743 = vld [vmem:[%s604 + $0x30] sm:$0xff]
        %v1744 = vld [vmem:[%s604 + $0x38] sm:$0xff]
        %v1745 = vld [vmem:[%s604 + $0x40] sm:$0xff]
        %v1746 = vld [vmem:[%s604 + $0x48] sm:$0xff]
        %v1747 = vld [vmem:[%s604 + $0x50] sm:$0xff]
        %v1748 = vld [vmem:[%s604 + $0x58] sm:$0xff]
        %v1749 = vld [vmem:[%s604 + $0x60] sm:$0xff]
        %v1750 = vld [vmem:[%s604 + $0x68] sm:$0xff]
        %v1751 = vld [vmem:[%s604 + $0x70] sm:$0xff]
        %v1752 = vld [vmem:[%s604 + $0x78] sm:$0xff]
        %v1753 = vld [vmem:[%s604 + $0x80] sm:$0xff]
        %v1754 = vld [vmem:[%s604 + $0x88] sm:$0xff]
        %v1755 = vld [vmem:[%s604 + $0x90] sm:$0xff]
        %v1756 = vld [vmem:[%s604 + $0x98] sm:$0xff]
        %v1757 = vld [vmem:[%s604 + $0xa0] sm:$0xff]
        %v1758 = vld [vmem:[%s604 + $0xa8] sm:$0xff]
        %v1759 = vld [vmem:[%s604 + $0xb0] sm:$0xff]
        %v1760 = vld [vmem:[%s604 + $0xb8] sm:$0xff]
        %v1761 = vld [vmem:[%s604 + $0xc0] sm:$0xff]
        %v1762 = vld [vmem:[%s604 + $0xc8] sm:$0xff]
        %v1763 = vld [vmem:[%s604 + $0xd0] sm:$0xff]
        %v1764 = vld [vmem:[%s604 + $0xd8] sm:$0xff]
        %v1765 = vld [vmem:[%s604 + $0xe0] sm:$0xff]
        %v1766 = vld [vmem:[%s604 + $0xe8] sm:$0xff]
        %v1767 = vld [vmem:[%s604 + $0xf0] sm:$0xff]
        %v1768 = vld [vmem:[%s604 + $0xf8] sm:$0xff]
        %v1769 = vld [vmem:[%s712] sm:$0x3]
        %v1771 = vlaneseq
        %v1772 = vshrl.u32 %v1771, 7
        %v1773 = vsub.s32 0, %v1772
        %v1774 = vrot.slane %v1769, %v1773
        %v1775 = vlaneseq
        %v1776 = vshrl.u32 %v1775, 7
        %v1777 = vsub.s32 1, %v1776
        %v1778 = vrot.slane %v1769, %v1777
        %1781 = vmatprep.subr.mxu0 %v1738
        %1782 = vmatpush1.msra.mxu0 %v1737
        %1783 = vmatprep.subr.mxu0 %v1740
        %1784 = vmatpush1.msra.mxu0 %v1739
        %1785 = vmatprep.subr.mxu0 %v1742
        %1786 = vmatpush1.msra.mxu0 %v1741
        %1787 = vmatprep.subr.mxu0 %v1744
        %1788 = vmatpush1.msra.mxu0 %v1743
        %1789 = vmatprep.subr.mxu0 %v1746
        %1790 = vmatpush1.msra.mxu0 %v1745
        %1791 = vmatprep.subr.mxu0 %v1748
        %1792 = vmatpush1.msra.mxu0 %v1747
        %1793 = vmatprep.subr.mxu0 %v1750
        %1794 = vmatpush1.msra.mxu0 %v1749
        %1795 = vmatprep.subr.mxu0 %v1752
        %1796 = vmatpush1.msra.mxu0 %v1751
        %1797 = vmatprep.subr.mxu0 %v1754
        %1798 = vmatpush1.msra.mxu0 %v1753
        %1799 = vmatprep.subr.mxu0 %v1756
        %1800 = vmatpush1.msra.mxu0 %v1755
        %1801 = vmatprep.subr.mxu0 %v1758
        %1802 = vmatpush1.msra.mxu0 %v1757
        %1803 = vmatprep.subr.mxu0 %v1760
        %1804 = vmatpush1.msra.mxu0 %v1759
        %1805 = vmatprep.subr.mxu0 %v1762
        %1806 = vmatpush1.msra.mxu0 %v1761
        %1807 = vmatprep.subr.mxu0 %v1764
        %1808 = vmatpush1.msra.mxu0 %v1763
        %1809 = vmatprep.subr.mxu0 %v1766
        %1810 = vmatpush1.msra.mxu0 %v1765
        %1811 = vmatprep.subr.mxu0 %v1768
        %1812 = vmatpush1.msra.mxu0 %v1767
        %1813 = vmatprep.subr.mxu0 0.0
        %1814 = vmatpush1.msra.mxu0 0.0
        %1815 = vmatprep.subr.mxu0 0.0
        %1816 = vmatpush1.msra.mxu0 0.0
        %1817 = vmatprep.subr.mxu0 0.0
        %1818 = vmatpush1.msra.mxu0 0.0
        %1819 = vmatprep.subr.mxu0 0.0
        %1820 = vmatpush1.msra.mxu0 0.0
        %1821 = vmatprep.subr.mxu0 0.0
        %1822 = vmatpush1.msra.mxu0 0.0
        %1823 = vmatprep.subr.mxu0 0.0
        %1824 = vmatpush1.msra.mxu0 0.0
        %1825 = vmatprep.subr.mxu0 0.0
        %1826 = vmatpush1.msra.mxu0 0.0
        %1827 = vmatprep.subr.mxu0 0.0
        %1828 = vmatpush1.msra.mxu0 0.0
        %1829 = vmatprep.subr.mxu0 0.0
        %1830 = vmatpush1.msra.mxu0 0.0
        %1831 = vmatprep.subr.mxu0 0.0
        %1832 = vmatpush1.msra.mxu0 0.0
        %1833 = vmatprep.subr.mxu0 0.0
        %1834 = vmatpush1.msra.mxu0 0.0
        %1835 = vmatprep.subr.mxu0 0.0
        %1836 = vmatpush1.msra.mxu0 0.0
        %1837 = vmatprep.subr.mxu0 0.0
        %1838 = vmatpush1.msra.mxu0 0.0
        %1839 = vmatprep.subr.mxu0 0.0
        %1840 = vmatpush1.msra.mxu0 0.0
        %1841 = vmatprep.subr.mxu0 0.0
        %1842 = vmatpush1.msra.mxu0 0.0
        %1843 = vmatprep.subr.mxu0 0.0
        %1844 = vmatpush1.msra.mxu0 0.0
        %1845 = vmatprep.mubr.f32.mxu0 0.0
        %1846 = vmatmul.mubr.f32.gmra.mrb[0].mxu0 %v1736
        %v1847 = vpop.f32.mrb[0].mxu0
        %v1848 = vadd.f32 %v1774, %v1847
        %v1849 = vpop.f32.mrb[0].mxu0
        %v1850 = vadd.f32 %v1778, %v1849
        %1851 = vdwg.mxu0
        %v1852 = vmul.f32 %v1848, 0.5
        %v1853 = vmul.f32 %v1850, 0.5
        %v1854 = vmul.f32 %v1848, 0.70710677
        %v1855 = vmul.f32 %v1850, 0.70710677
        %v1856 = vand.u32 2147483647, %v1854
        %v1857 = vand.u32 2147483647, %v1855
        %v1858 = vmul.f32 %v1856, 0.3275911
        %v1859 = vmul.f32 %v1857, 0.3275911
        %v1860 = vadd.f32 %v1858, 1.0
        %v1861 = vadd.f32 %v1859, 1.0
        %v1862 = vrcp.pop %v1860
        %v1863 = vmul.f32 1.0, %v1862
        %v1864 = vrcp.pop %v1861
        %v1865 = vmul.f32 1.0, %v1864
        %v1866 = vmul.f32 %v1863, 1.0614054
        %v1867 = vmul.f32 %v1865, 1.0614054
        %v1868 = vadd.f32 %v1866, -1.4531521
        %v1869 = vadd.f32 %v1867, -1.4531521
        %v1870 = vmul.f32 %v1868, %v1863
        %v1871 = vmul.f32 %v1869, %v1865
        %v1872 = vadd.f32 %v1870, 1.4214138
        %v1873 = vadd.f32 %v1871, 1.4214138
        %v1874 = vmul.f32 %v1872, %v1863
        %v1875 = vmul.f32 %v1873, %v1865
        %v1876 = vadd.f32 %v1874, -0.28449672
        %v1877 = vadd.f32 %v1875, -0.28449672
        %v1878 = vmul.f32 %v1876, %v1863
        %v1879 = vmul.f32 %v1877, %v1865
        %v1880 = vadd.f32 %v1878, 0.2548296
        %v1881 = vadd.f32 %v1879, 0.2548296
        %v1882 = vmul.f32 %v1880, %v1863
        %v1883 = vmul.f32 %v1881, %v1865
        %v1884 = vsub.f32 0.0, %v1856
        %v1885 = vsub.f32 0.0, %v1857
        %v1886 = vmul.f32 %v1884, %v1856
        %v1887 = vmul.f32 %v1885, %v1857
        %v1888 = vmul.f32 %v1886, 1.442695
        %v1889 = vpow.pop %v1888
        %v1890 = vmul.f32 %v1887, 1.442695
        %v1891 = vpow.pop %v1890
        %v1892 = vmul.f32 %v1882, %v1889
        %v1893 = vmul.f32 %v1883, %v1891
        %v1894 = vsub.f32 1.0, %v1892
        %v1895 = vsub.f32 1.0, %v1893
        %vm1896 = vcmp.ge.f32.partialorder %v1854, 0.0
        %vm1897 = vcmp.ge.f32.partialorder %v1855, 0.0
        %v1898 = vsub.f32 0.0, %v1894
        %v1899 = vsub.f32 0.0, %v1895
        %v1900 = vsel %vm1896, %v1894, %v1898
        %v1901 = vsel %vm1897, %v1895, %v1899
        %v1902 = vadd.f32 %v1900, 1.0
        %v1903 = vadd.f32 %v1901, 1.0
        %v1904 = vmul.f32 %v1852, %v1902
        %v1905 = vmul.f32 %v1853, %v1903
        %v1906 = vld [vmem:[%s613] sm:$0xff]
        %v1907 = vld [vmem:[%s613 + $0x8] sm:$0xff]
        %v1908 = vld [vmem:[%s613 + $0x10] sm:$0xff]
        %v1909 = vld [vmem:[%s613 + $0x18] sm:$0xff]
        %v1910 = vld [vmem:[%s613 + $0x20] sm:$0xff]
        %v1911 = vld [vmem:[%s613 + $0x28] sm:$0xff]
        %v1912 = vld [vmem:[%s613 + $0x30] sm:$0xff]
        %v1913 = vld [vmem:[%s613 + $0x38] sm:$0xff]
        %v1914 = vld [vmem:[%s613 + $0x40] sm:$0xff]
        %v1915 = vld [vmem:[%s613 + $0x48] sm:$0xff]
        %v1916 = vld [vmem:[%s613 + $0x50] sm:$0xff]
        %v1917 = vld [vmem:[%s613 + $0x58] sm:$0xff]
        %v1918 = vld [vmem:[%s613 + $0x60] sm:$0xff]
        %v1919 = vld [vmem:[%s613 + $0x68] sm:$0xff]
        %v1920 = vld [vmem:[%s613 + $0x70] sm:$0xff]
        %v1921 = vld [vmem:[%s613 + $0x78] sm:$0xff]
        %v1922 = vld [vmem:[%s613 + $0x80] sm:$0xff]
        %v1923 = vld [vmem:[%s613 + $0x88] sm:$0xff]
        %v1924 = vld [vmem:[%s613 + $0x90] sm:$0xff]
        %v1925 = vld [vmem:[%s613 + $0x98] sm:$0xff]
        %v1926 = vld [vmem:[%s613 + $0xa0] sm:$0xff]
        %v1927 = vld [vmem:[%s613 + $0xa8] sm:$0xff]
        %v1928 = vld [vmem:[%s613 + $0xb0] sm:$0xff]
        %v1929 = vld [vmem:[%s613 + $0xb8] sm:$0xff]
        %v1930 = vld [vmem:[%s613 + $0xc0] sm:$0xff]
        %v1931 = vld [vmem:[%s613 + $0xc8] sm:$0xff]
        %v1932 = vld [vmem:[%s613 + $0xd0] sm:$0xff]
        %v1933 = vld [vmem:[%s613 + $0xd8] sm:$0xff]
        %v1934 = vld [vmem:[%s613 + $0xe0] sm:$0xff]
        %v1935 = vld [vmem:[%s613 + $0xe8] sm:$0xff]
        %v1936 = vld [vmem:[%s613 + $0xf0] sm:$0xff]
        %v1937 = vld [vmem:[%s613 + $0xf8] sm:$0xff]
        %1938 = vmatprep.subr.mxu0 0.0
        %1939 = vmatpush1.msra.mxu0 %v1906
        %1940 = vmatprep.subr.mxu0 0.0
        %1941 = vmatpush1.msra.mxu0 %v1907
        %1942 = vmatprep.subr.mxu0 0.0
        %1943 = vmatpush1.msra.mxu0 %v1908
        %1944 = vmatprep.subr.mxu0 0.0
        %1945 = vmatpush1.msra.mxu0 %v1909
        %1946 = vmatprep.subr.mxu0 0.0
        %1947 = vmatpush1.msra.mxu0 %v1910
        %1948 = vmatprep.subr.mxu0 0.0
        %1949 = vmatpush1.msra.mxu0 %v1911
        %1950 = vmatprep.subr.mxu0 0.0
        %1951 = vmatpush1.msra.mxu0 %v1912
        %1952 = vmatprep.subr.mxu0 0.0
        %1953 = vmatpush1.msra.mxu0 %v1913
        %1954 = vmatprep.subr.mxu0 0.0
        %1955 = vmatpush1.msra.mxu0 %v1914
        %1956 = vmatprep.subr.mxu0 0.0
        %1957 = vmatpush1.msra.mxu0 %v1915
        %1958 = vmatprep.subr.mxu0 0.0
        %1959 = vmatpush1.msra.mxu0 %v1916
        %1960 = vmatprep.subr.mxu0 0.0
        %1961 = vmatpush1.msra.mxu0 %v1917
        %1962 = vmatprep.subr.mxu0 0.0
        %1963 = vmatpush1.msra.mxu0 %v1918
        %1964 = vmatprep.subr.mxu0 0.0
        %1965 = vmatpush1.msra.mxu0 %v1919
        %1966 = vmatprep.subr.mxu0 0.0
        %1967 = vmatpush1.msra.mxu0 %v1920
        %1968 = vmatprep.subr.mxu0 0.0
        %1969 = vmatpush1.msra.mxu0 %v1921
        %1970 = vmatprep.subr.mxu0 0.0
        %1971 = vmatpush1.msra.mxu0 %v1922
        %1972 = vmatprep.subr.mxu0 0.0
        %1973 = vmatpush1.msra.mxu0 %v1923
        %1974 = vmatprep.subr.mxu0 0.0
        %1975 = vmatpush1.msra.mxu0 %v1924
        %1976 = vmatprep.subr.mxu0 0.0
        %1977 = vmatpush1.msra.mxu0 %v1925
        %1978 = vmatprep.subr.mxu0 0.0
        %1979 = vmatpush1.msra.mxu0 %v1926
        %1980 = vmatprep.subr.mxu0 0.0
        %1981 = vmatpush1.msra.mxu0 %v1927
        %1982 = vmatprep.subr.mxu0 0.0
        %1983 = vmatpush1.msra.mxu0 %v1928
        %1984 = vmatprep.subr.mxu0 0.0
        %1985 = vmatpush1.msra.mxu0 %v1929
        %1986 = vmatprep.subr.mxu0 0.0
        %1987 = vmatpush1.msra.mxu0 %v1930
        %1988 = vmatprep.subr.mxu0 0.0
        %1989 = vmatpush1.msra.mxu0 %v1931
        %1990 = vmatprep.subr.mxu0 0.0
        %1991 = vmatpush1.msra.mxu0 %v1932
        %1992 = vmatprep.subr.mxu0 0.0
        %1993 = vmatpush1.msra.mxu0 %v1933
        %1994 = vmatprep.subr.mxu0 0.0
        %1995 = vmatpush1.msra.mxu0 %v1934
        %1996 = vmatprep.subr.mxu0 0.0
        %1997 = vmatpush1.msra.mxu0 %v1935
        %1998 = vmatprep.subr.mxu0 0.0
        %1999 = vmatpush1.msra.mxu0 %v1936
        %2000 = vmatprep.subr.mxu0 0.0
        %2001 = vmatpush1.msra.mxu0 %v1937
        %2002 = vmatprep.mubr.f32.mxu0 %v1905
        %2003 = vmatmul.mubr.f32.gmra.mrb[0].mxu0 %v1904
        %v2004 = vpop.f32.mrb[0].mxu0
        %v2005 = vadd.f32 0.0, %v2004
        %v2006 = vpop.f32.mrb[0].mxu0
        %2007 = vdwg.mxu0
        %v2008 = vadd.f32 %v1709, %v2005
        %v2009 = vld [vmem:[%s715] sm:$0x1]
        %v2011 = vlaneseq
        %v2012 = vshrl.u32 %v2011, 7
        %v2013 = vsub.s32 0, %v2012
        %v2014 = vrot.slane %v2009, %v2013
        %v2016 = vadd.f32 %v2008, %v2014
        %2017 = vst [vmem:[%s696] sm:$0xff] %v2016
        %s2018 = sand.u32 %s370, 1
        %s2019 = scalar_lea.sflag [#allocation4], %s2018
        %s2020 = sand.u32 %s370, 1
        %s2021 = smul.addr %s2020, 8
        %s2022 = scalar_lea.vmem [#allocation13], %s2021
        // Predicated region
        $region97: #{tpu_custom_call.1} parent=67 // pred_check
          %p2023 = pneg %p380
        $region98: #{tpu_custom_call.1} parent=67 // pred_check_branch
          %2025 = sbr.rel (%p2023) target = $region100
        $region99: #{tpu_custom_call.1} parent=67 // pred_region
          %s2027 = ssub.s32 128, 128
          %2028 = vsyncadd %s2019, %s2027
          %s2029 = smul.addr %s42, 128
          %s2030 = scalar_lea.hbm %s12, %s2029
          %s2032 = sshll.u32 %s2022, 4
          %s2033 = int_to_ptr.vmem [resolvable:$true] %s2032
          %2035 = dma.vmem_to_hbm [thread:$0]  %s2033, 128, %s2030, %s2019
        $region100: #{tpu_custom_call.1} parent=67 // pred_fallthru
          _
      $region68: #{tpu_custom_call.1} parent=5 // pred_fallthru
        _
      %p2036 = scmp.le.s32.totalorder 2, %s33
      // Predicated region
      $region101: #{tpu_custom_call.1} parent=5 // pred_check
        %p2037 = pneg %p2036
      $region102: #{tpu_custom_call.1} parent=5 // pred_check_branch
        %2039 = sbr.rel (%p2037) target = $region104
      $region103: #{tpu_custom_call.1} parent=5 // pred_region
        %s2040 = ssub.s32 %s33, 2
        // Predicated region
        $region105: #{tpu_custom_call.1} parent=103 // pred_check
          %p2041 = pneg %p386
        $region106: #{tpu_custom_call.1} parent=103 // pred_check_branch
          %2043 = sbr.rel (%p2041) target = $region108
        $region107: #{tpu_custom_call.1} parent=103 // pred_region
          %s2044 = sand.u32 %s371, 1
          %s2045 = scalar_lea.sflag [#allocation4], %s2044
          %s2046 = sand.u32 %s371, 1
          %s2047 = smul.addr %s2046, 8
          %s2048 = scalar_lea.vmem [#allocation13], %s2047
          %2049 = dma.done %s2045, 128
        $region108: #{tpu_custom_call.1} parent=103 // pred_fallthru
          _
      $region104: #{tpu_custom_call.1} parent=5 // pred_fallthru
        _
    $region6: #{tpu_custom_call.1} parent=1 // loop_footer
      %s37 = sadd.s32 1, %s33
    $region7: #{tpu_custom_call.1} parent=1 // loop_footer_branch
      %32 = sbr.rel target = $region3
    $region8: #{tpu_custom_call.1} parent=1 // loop_exit
      _
    %2050 = vsyncpa [#allocation3], 1
    %s2051 = scalar_lea.sflag [#allocation3], 1
    %2052 = vsyncpa %s2051, 1
    %2053 = vsyncpa [#allocation6], 1
    %s2054 = scalar_lea.sflag [#allocation6], 1
    %2055 = vsyncpa %s2054, 1
    %2056 = vsyncpa [#allocation9], 1
    %s2057 = scalar_lea.sflag [#allocation9], 1
    %2058 = vsyncpa %s2057, 1
    %2059 = vsyncpa [#allocation12], 1
    %s2060 = scalar_lea.sflag [#allocation12], 1
    %2061 = vsyncpa %s2060, 1
    %2062 = vsyncpa [#allocation4], 1
    %s2063 = scalar_lea.sflag [#allocation4], 1
    %2064 = vsyncpa %s2063, 1

</llo_original>
